<compile_context>
chip_gen: v7x
topology: tpu7x:2x2x1
jax: 0.10.0
libtpu: 0.0.40
codegen_flags: <defaults>
</compile_context>

<pallas_src>
import jax
import jax.numpy as jnp
from jax import lax
from jax.experimental import pallas as pl
from jax.experimental.pallas import tpu as pltpu

LRELU_SLOPE = 0.1
BN_EPS = 1e-5
KS = 3       # kernel size
STRIDE = 2
PAD = 1


# ----------------------------- Pallas kernel -----------------------------

def _conv3d_bn_lrelu_kernel(p_ref, w_ref, b_ref, g_ref, beta_ref, o_ref):
    """Fused: im2col-matmul conv + bias + BatchNorm(batch stats) + LeakyReLU(0.1).

    p_ref   : (M, K)  im2col patches, M = B*Do*Ho*Wo, K = Cin*27
    w_ref   : (K, N)  conv weight, N = Cout
    b_ref   : (1, N)  conv bias
    g_ref   : (1, N)  BN gamma
    beta_ref: (1, N)  BN beta
    o_ref   : (M, N)
    """
    y = jnp.dot(p_ref[...], w_ref[...], preferred_element_type=jnp.float32)
    y = y + b_ref[...]
    # BatchNorm3d, training-mode batch statistics per output channel
    # (mean/var over the flattened N*D*H*W axis == rows of y), biased variance.
    mean = jnp.mean(y, axis=0, keepdims=True)
    var = jnp.mean((y - mean) ** 2, axis=0, keepdims=True)
    y = (y - mean) * lax.rsqrt(var + BN_EPS) * g_ref[...] + beta_ref[...]
    # LeakyReLU(0.1)
    o_ref[...] = jnp.where(y >= 0, y, LRELU_SLOPE * y)


def conv3d_bn_lrelu(patches, w_mat, bias, gamma, beta):
    """(M,K) @ (K,N) + bias, then BN + LeakyReLU; whole problem in one VMEM block."""
    M, K = patches.shape
    N = w_mat.shape[1]
    return pl.pallas_call(
        _conv3d_bn_lrelu_kernel,
        grid=(1,),
        in_specs=[pl.BlockSpec((M, K), lambda i: (0, 0)),
                  pl.BlockSpec((K, N), lambda i: (0, 0)),
                  pl.BlockSpec((1, N), lambda i: (0, 0)),
                  pl.BlockSpec((1, N), lambda i: (0, 0)),
                  pl.BlockSpec((1, N), lambda i: (0, 0))],
        out_specs=pl.BlockSpec((M, N), lambda i: (0, 0)),
        out_shape=jax.ShapeDtypeStruct((M, N), jnp.float32),
        compiler_params=pltpu.CompilerParams(
            dimension_semantics=("arbitrary",)),
    )(patches, w_mat, bias.reshape(1, N), gamma.reshape(1, N), beta.reshape(1, N))


# ----------------------------- plain-JAX glue -----------------------------

def _out_size(n):
    return (n + 2 * PAD - KS) // STRIDE + 1


def im2col_3d(x):
    """x: (B, Cin, D, H, W) -> patches (B*Do*Ho*Wo, Cin*27), K order = (ci, kd, kh, kw)."""
    B, C, D, H, W = x.shape
    Do, Ho, Wo = _out_size(D), _out_size(H), _out_size(W)
    xp = jnp.pad(x, ((0, 0), (0, 0), (PAD, PAD), (PAD, PAD), (PAD, PAD)))
    cols = []
    for kz in range(KS):
        for ky in range(KS):
            for kx in range(KS):
                cols.append(xp[:, :,
                               kz:kz + STRIDE * (Do - 1) + 1:STRIDE,
                               ky:ky + STRIDE * (Ho - 1) + 1:STRIDE,
                               kx:kx + STRIDE * (Wo - 1) + 1:STRIDE])
    p = jnp.stack(cols, axis=2)                       # (B, C, 27, Do, Ho, Wo)
    p = p.transpose(0, 3, 4, 5, 1, 2)                 # (B, Do, Ho, Wo, C, 27)
    return p.reshape(B * Do * Ho * Wo, C * KS * KS * KS), (Do, Ho, Wo)


def forward(params, x):
    """ConvNet.forward: Conv3d(k=3,s=2,p=1) -> BatchNorm3d -> LeakyReLU(0.1)."""
    B = x.shape[0]
    Cout = params["w"].shape[0]
    patches, (Do, Ho, Wo) = im2col_3d(x)
    # torch Conv3d weight (Cout, Cin, kD, kH, kW) -> (K, Cout), K order (ci, kd, kh, kw)
    w_mat = params["w"].reshape(Cout, -1).T
    y = conv3d_bn_lrelu(patches, w_mat, params["b"], params["bn_g"], params["bn_b"])
    # (M, Cout) -> NCDHW
    return y.reshape(B, Do, Ho, Wo, Cout).transpose(0, 4, 1, 2, 3)


def reference(params, x):
    """Pure-JAX reference for validation (same training-mode BN semantics)."""
    y = lax.conv_general_dilated(
        x, params["w"],
        window_strides=(STRIDE, STRIDE, STRIDE),
        padding=((PAD, PAD), (PAD, PAD), (PAD, PAD)),
        dimension_numbers=("NCDHW", "OIDHW", "NCDHW"))
    y = y + params["b"].reshape(1, -1, 1, 1, 1)
    mean = jnp.mean(y, axis=(0, 2, 3, 4), keepdims=True)
    var = jnp.mean((y - mean) ** 2, axis=(0, 2, 3, 4), keepdims=True)
    y = ((y - mean) * lax.rsqrt(var + BN_EPS)
         * params["bn_g"].reshape(1, -1, 1, 1, 1)
         + params["bn_b"].reshape(1, -1, 1, 1, 1))
    return jnp.where(y >= 0, y, LRELU_SLOPE * y)


# ----------------------------- main -----------------------------

if __name__ == "__main__":
    B, Cin, Cout = 2, 4, 8
    D, H, W = 8, 16, 16

    key = jax.random.PRNGKey(0)
    kx, kw, kb = jax.random.split(key, 3)
    x = jax.random.normal(kx, (B, Cin, D, H, W), dtype=jnp.float32)
    params = {
        "w": jax.random.normal(kw, (Cout, Cin, KS, KS, KS), dtype=jnp.float32)
             / jnp.sqrt(float(Cin * KS * KS * KS)),
        "b": 0.02 * jax.random.normal(kb, (Cout,), dtype=jnp.float32),
        "bn_g": jnp.ones((Cout,), jnp.float32),    # torch BatchNorm3d default affine init
        "bn_b": jnp.zeros((Cout,), jnp.float32),
    }

    out = forward(params, x)
    out = jax.block_until_ready(out)

    Do, Ho, Wo = _out_size(D), _out_size(H), _out_size(W)
    assert out.shape == (B, Cout, Do, Ho, Wo), out.shape
    assert bool(jnp.all(jnp.isfinite(out)))

    ref = reference(params, x)
    max_err = float(jnp.max(jnp.abs(out - ref)))
    assert jnp.allclose(out, ref, atol=2e-2, rtol=2e-2), max_err

    print("KERNEL_OK")
</pallas_src>

<mosaic_0001>
module attributes {stable_mosaic.version = 11 : i64} {
  func.func @_conv3d_bn_lrelu_kernel(%arg0: i32, %arg1: memref<512x108xf32, #tpu.memory_space<vmem>>, %arg2: memref<108x8xf32, #tpu.memory_space<vmem>>, %arg3: memref<1x8xf32, #tpu.memory_space<vmem>>, %arg4: memref<1x8xf32, #tpu.memory_space<vmem>>, %arg5: memref<1x8xf32, #tpu.memory_space<vmem>>, %arg6: memref<512x8xf32, #tpu.memory_space<vmem>>) attributes {dimension_semantics = [#tpu.dimension_semantics<arbitrary>], iteration_bounds = array<i64: 1>, scalar_prefetch = 0 : i64, scratch_operands = 0 : i64, tpu.core_type = #tpu.core_type<tc>, window_params = [{pipeline_mode = #tpu.pipeline_mode<synchronous>, transform_indices = @transform_0, window_bounds = array<i64: 512, 108>}, {pipeline_mode = #tpu.pipeline_mode<synchronous>, transform_indices = @transform_1, window_bounds = array<i64: 108, 8>}, {pipeline_mode = #tpu.pipeline_mode<synchronous>, transform_indices = @transform_2, window_bounds = array<i64: 1, 8>}, {pipeline_mode = #tpu.pipeline_mode<synchronous>, transform_indices = @transform_3, window_bounds = array<i64: 1, 8>}, {pipeline_mode = #tpu.pipeline_mode<synchronous>, transform_indices = @transform_4, window_bounds = array<i64: 1, 8>}, {pipeline_mode = #tpu.pipeline_mode<synchronous>, transform_indices = @transform_5, window_bounds = array<i64: 512, 8>}]} {
    %c0 = arith.constant 0 : index
    %c0_0 = arith.constant 0 : index
    %0 = vector.load %arg1[%c0, %c0_0] : memref<512x108xf32, #tpu.memory_space<vmem>>, vector<512x108xf32>
    %c0_1 = arith.constant 0 : index
    %c0_2 = arith.constant 0 : index
    %1 = vector.load %arg2[%c0_1, %c0_2] : memref<108x8xf32, #tpu.memory_space<vmem>>, vector<108x8xf32>
    %cst = arith.constant dense<0.000000e+00> : vector<512x8xf32>
    %2 = tpu.matmul %0, %1, %cst {dimension_numbers = #tpu.dot_dimension_numbers<[1], [0], [0], [1], [0, 0, 1, 1], [], []>} : vector<512x108xf32>, vector<108x8xf32>, vector<512x8xf32> -> vector<512x8xf32>
    %c0_3 = arith.constant 0 : index
    %c0_4 = arith.constant 0 : index
    %3 = vector.load %arg3[%c0_3, %c0_4] : memref<1x8xf32, #tpu.memory_space<vmem>>, vector<1x8xf32>
    %4 = vector.broadcast %3 : vector<1x8xf32> to vector<512x8xf32>
    %5 = arith.addf %2, %4 : vector<512x8xf32>
    %cst_5 = arith.constant dense<0.000000e+00> : vector<8xf32>
    %6 = vector.multi_reduction <add>, %5, %cst_5 [0] : vector<512x8xf32> to vector<8xf32>
    %7 = vector.shape_cast %6 : vector<8xf32> to vector<1x8xf32>
    %cst_6 = arith.constant 5.120000e+02 : f32
    %8 = vector.broadcast %cst_6 : f32 to vector<1x8xf32>
    %9 = arith.divf %7, %8 : vector<1x8xf32>
    %10 = vector.broadcast %9 : vector<1x8xf32> to vector<512x8xf32>
    %11 = arith.subf %5, %10 : vector<512x8xf32>
    %12 = arith.mulf %11, %11 : vector<512x8xf32>
    %cst_7 = arith.constant dense<0.000000e+00> : vector<8xf32>
    %13 = vector.multi_reduction <add>, %12, %cst_7 [0] : vector<512x8xf32> to vector<8xf32>
    %14 = vector.shape_cast %13 : vector<8xf32> to vector<1x8xf32>
    %cst_8 = arith.constant 5.120000e+02 : f32
    %15 = vector.broadcast %cst_8 : f32 to vector<1x8xf32>
    %16 = arith.divf %14, %15 : vector<1x8xf32>
    %17 = vector.broadcast %9 : vector<1x8xf32> to vector<512x8xf32>
    %18 = arith.subf %5, %17 : vector<512x8xf32>
    %cst_9 = arith.constant 9.99999974E-6 : f32
    %19 = vector.broadcast %cst_9 : f32 to vector<1x8xf32>
    %20 = arith.addf %16, %19 : vector<1x8xf32>
    %21 = math.rsqrt %20 : vector<1x8xf32>
    %22 = vector.broadcast %21 : vector<1x8xf32> to vector<512x8xf32>
    %23 = arith.mulf %18, %22 : vector<512x8xf32>
    %c0_10 = arith.constant 0 : index
    %c0_11 = arith.constant 0 : index
    %24 = vector.load %arg4[%c0_10, %c0_11] : memref<1x8xf32, #tpu.memory_space<vmem>>, vector<1x8xf32>
    %25 = vector.broadcast %24 : vector<1x8xf32> to vector<512x8xf32>
    %26 = arith.mulf %23, %25 : vector<512x8xf32>
    %c0_12 = arith.constant 0 : index
    %c0_13 = arith.constant 0 : index
    %27 = vector.load %arg5[%c0_12, %c0_13] : memref<1x8xf32, #tpu.memory_space<vmem>>, vector<1x8xf32>
    %28 = vector.broadcast %27 : vector<1x8xf32> to vector<512x8xf32>
    %29 = arith.addf %26, %28 : vector<512x8xf32>
    %cst_14 = arith.constant 0.000000e+00 : f32
    %30 = vector.broadcast %cst_14 : f32 to vector<512x8xf32>
    %31 = arith.cmpf oge, %29, %30 : vector<512x8xf32>
    %cst_15 = arith.constant 1.000000e-01 : f32
    %32 = vector.broadcast %cst_15 : f32 to vector<512x8xf32>
    %33 = arith.mulf %32, %29 : vector<512x8xf32>
    %34 = arith.select %31, %29, %33 : vector<512x8xi1>, vector<512x8xf32>
    %c0_16 = arith.constant 0 : index
    %c0_17 = arith.constant 0 : index
    %35 = vector.load %arg6[%c0_16, %c0_17] : memref<512x8xf32, #tpu.memory_space<vmem>>, vector<512x8xf32>
    tpu.vector_store %arg6[%c0_16, %c0_17], %34 {strides = array<i32>} : memref<512x8xf32, #tpu.memory_space<vmem>>, vector<512x8xf32>,
    return
  }
  func.func @transform_0(%arg0: i32) -> (i32, i32) {
    %c0_i32 = arith.constant 0 : i32
    %c0_i32_0 = arith.constant 0 : i32
    %c0_i32_1 = arith.constant 0 : i32
    return %c0_i32, %c0_i32_0 : i32, i32
  }
  func.func @transform_1(%arg0: i32) -> (i32, i32) {
    %c0_i32 = arith.constant 0 : i32
    %c0_i32_0 = arith.constant 0 : i32
    %c0_i32_1 = arith.constant 0 : i32
    return %c0_i32, %c0_i32_0 : i32, i32
  }
  func.func @transform_2(%arg0: i32) -> (i32, i32) {
    %c0_i32 = arith.constant 0 : i32
    %c0_i32_0 = arith.constant 0 : i32
    %c0_i32_1 = arith.constant 0 : i32
    return %c0_i32, %c0_i32_0 : i32, i32
  }
  func.func @transform_3(%arg0: i32) -> (i32, i32) {
    %c0_i32 = arith.constant 0 : i32
    %c0_i32_0 = arith.constant 0 : i32
    %c0_i32_1 = arith.constant 0 : i32
    return %c0_i32, %c0_i32_0 : i32, i32
  }
  func.func @transform_4(%arg0: i32) -> (i32, i32) {
    %c0_i32 = arith.constant 0 : i32
    %c0_i32_0 = arith.constant 0 : i32
    %c0_i32_1 = arith.constant 0 : i32
    return %c0_i32, %c0_i32_0 : i32, i32
  }
  func.func @transform_5(%arg0: i32) -> (i32, i32) {
    %c0_i32 = arith.constant 0 : i32
    %c0_i32_0 = arith.constant 0 : i32
    %c0_i32_1 = arith.constant 0 : i32
    return %c0_i32, %c0_i32_0 : i32, i32
  }
}

</mosaic_0001>

<llo_original>
// kernel: tpu_custom_call.1
$region0: #{tpu_custom_call.1}
  #allocation0 [shape = 'u32[]', space=smem, size = 0x4, offset = 0x4, fixed_abs, tag = 'smem constant byte address 0x4 - core index']
  #allocation1 [shape = 'u32[144,128]{1,0:T(1,128)}', space=vmem, size = 0x12000, scoped, tag = 'internal scratch']
  %s0 = inlined_call_operand.vmem [shape: f32[512,108], index: 0, kind: input, shape index: {}]
  %s1 = inlined_call_operand.vmem [shape: f32[108,8], index: 1, kind: input, shape index: {}]
  %s2 = inlined_call_operand.vmem [shape: f32[1,8], index: 2, kind: input, shape index: {}]
  %s3 = inlined_call_operand.vmem [shape: f32[1,8], index: 3, kind: input, shape index: {}]
  %s4 = inlined_call_operand.vmem [shape: f32[1,8], index: 4, kind: input, shape index: {}]
  %s5 = inlined_call_operand.vmem [shape: f32[512,8], index: 5, kind: output, shape index: {}]
  %s6 = sld [smem:[#allocation0]]
  $region30: #{tpu_custom_call.1} parent=0
    _
  %s8 = ssub.s32 1, %s6
  %s9 = scalar_select 0, %s8, %s6
  // Predicated region
  $region2: #{tpu_custom_call.1} parent=0 // pred_check
    _
  $region3: #{tpu_custom_call.1} parent=0 // pred_check_branch
    %11 = sbr.rel (0) target = $region5
  $region4: #{tpu_custom_call.1} parent=0 // pred_region
    _
  $region5: #{tpu_custom_call.1} parent=0 // pred_fallthru
    _
  // Predicated region
  $region6: #{tpu_custom_call.1} parent=0 // pred_check
    _
  $region7: #{tpu_custom_call.1} parent=0 // pred_check_branch
    %13 = sbr.rel (0) target = $region9
  $region8: #{tpu_custom_call.1} parent=0 // pred_region
    _
  $region9: #{tpu_custom_call.1} parent=0 // pred_fallthru
    _
  // Predicated region
  $region10: #{tpu_custom_call.1} parent=0 // pred_check
    _
  $region11: #{tpu_custom_call.1} parent=0 // pred_check_branch
    %15 = sbr.rel (0) target = $region13
  $region12: #{tpu_custom_call.1} parent=0 // pred_region
    _
  $region13: #{tpu_custom_call.1} parent=0 // pred_fallthru
    _
  // Predicated region
  $region14: #{tpu_custom_call.1} parent=0 // pred_check
    _
  $region15: #{tpu_custom_call.1} parent=0 // pred_check_branch
    %17 = sbr.rel (0) target = $region17
  $region16: #{tpu_custom_call.1} parent=0 // pred_region
    _
  $region17: #{tpu_custom_call.1} parent=0 // pred_fallthru
    _
  // Predicated region
  $region18: #{tpu_custom_call.1} parent=0 // pred_check
    _
  $region19: #{tpu_custom_call.1} parent=0 // pred_check_branch
    %19 = sbr.rel (0) target = $region21
  $region20: #{tpu_custom_call.1} parent=0 // pred_region
    _
  $region21: #{tpu_custom_call.1} parent=0 // pred_fallthru
    _
  %v20 = vld [vmem:[%s0] sm:$0xff]
  %v21 = vld [vmem:[%s0 + $0x8] sm:$0xff]
  %v22 = vld [vmem:[%s0 + $0x10] sm:$0xff]
  %v23 = vld [vmem:[%s0 + $0x18] sm:$0xff]
  %v24 = vld [vmem:[%s0 + $0x20] sm:$0xff]
  %v25 = vld [vmem:[%s0 + $0x28] sm:$0xff]
  %v26 = vld [vmem:[%s0 + $0x30] sm:$0xff]
  %v27 = vld [vmem:[%s0 + $0x38] sm:$0xff]
  %v28 = vld [vmem:[%s0 + $0x40] sm:$0xff]
  %v29 = vld [vmem:[%s0 + $0x48] sm:$0xff]
  %v30 = vld [vmem:[%s0 + $0x50] sm:$0xff]
  %v31 = vld [vmem:[%s0 + $0x58] sm:$0xff]
  %v32 = vld [vmem:[%s0 + $0x60] sm:$0xff]
  %v33 = vld [vmem:[%s0 + $0x68] sm:$0xff]
  %v34 = vld [vmem:[%s0 + $0x70] sm:$0xff]
  %v35 = vld [vmem:[%s0 + $0x78] sm:$0xff]
  %v36 = vld [vmem:[%s0 + $0x80] sm:$0xff]
  %v37 = vld [vmem:[%s0 + $0x88] sm:$0xff]
  %v38 = vld [vmem:[%s0 + $0x90] sm:$0xff]
  %v39 = vld [vmem:[%s0 + $0x98] sm:$0xff]
  %v40 = vld [vmem:[%s0 + $0xa0] sm:$0xff]
  %v41 = vld [vmem:[%s0 + $0xa8] sm:$0xff]
  %v42 = vld [vmem:[%s0 + $0xb0] sm:$0xff]
  %v43 = vld [vmem:[%s0 + $0xb8] sm:$0xff]
  %v44 = vld [vmem:[%s0 + $0xc0] sm:$0xff]
  %v45 = vld [vmem:[%s0 + $0xc8] sm:$0xff]
  %v46 = vld [vmem:[%s0 + $0xd0] sm:$0xff]
  %v47 = vld [vmem:[%s0 + $0xd8] sm:$0xff]
  %v48 = vld [vmem:[%s0 + $0xe0] sm:$0xff]
  %v49 = vld [vmem:[%s0 + $0xe8] sm:$0xff]
  %v50 = vld [vmem:[%s0 + $0xf0] sm:$0xff]
  %v51 = vld [vmem:[%s0 + $0xf8] sm:$0xff]
  %v52 = vld [vmem:[%s0 + $0x100] sm:$0xff]
  %v53 = vld [vmem:[%s0 + $0x108] sm:$0xff]
  %v54 = vld [vmem:[%s0 + $0x110] sm:$0xff]
  %v55 = vld [vmem:[%s0 + $0x118] sm:$0xff]
  %v56 = vld [vmem:[%s0 + $0x120] sm:$0xff]
  %v57 = vld [vmem:[%s0 + $0x128] sm:$0xff]
  %v58 = vld [vmem:[%s0 + $0x130] sm:$0xff]
  %v59 = vld [vmem:[%s0 + $0x138] sm:$0xff]
  %v60 = vld [vmem:[%s0 + $0x140] sm:$0xff]
  %v61 = vld [vmem:[%s0 + $0x148] sm:$0xff]
  %v62 = vld [vmem:[%s0 + $0x150] sm:$0xff]
  %v63 = vld [vmem:[%s0 + $0x158] sm:$0xff]
  %v64 = vld [vmem:[%s0 + $0x160] sm:$0xff]
  %v65 = vld [vmem:[%s0 + $0x168] sm:$0xff]
  %v66 = vld [vmem:[%s0 + $0x170] sm:$0xff]
  %v67 = vld [vmem:[%s0 + $0x178] sm:$0xff]
  %v68 = vld [vmem:[%s0 + $0x180] sm:$0xff]
  %v69 = vld [vmem:[%s0 + $0x188] sm:$0xff]
  %v70 = vld [vmem:[%s0 + $0x190] sm:$0xff]
  %v71 = vld [vmem:[%s0 + $0x198] sm:$0xff]
  %v72 = vld [vmem:[%s0 + $0x1a0] sm:$0xff]
  %v73 = vld [vmem:[%s0 + $0x1a8] sm:$0xff]
  %v74 = vld [vmem:[%s0 + $0x1b0] sm:$0xff]
  %v75 = vld [vmem:[%s0 + $0x1b8] sm:$0xff]
  %v76 = vld [vmem:[%s0 + $0x1c0] sm:$0xff]
  %v77 = vld [vmem:[%s0 + $0x1c8] sm:$0xff]
  %v78 = vld [vmem:[%s0 + $0x1d0] sm:$0xff]
  %v79 = vld [vmem:[%s0 + $0x1d8] sm:$0xff]
  %v80 = vld [vmem:[%s0 + $0x1e0] sm:$0xff]
  %v81 = vld [vmem:[%s0 + $0x1e8] sm:$0xff]
  %v82 = vld [vmem:[%s0 + $0x1f0] sm:$0xff]
  %v83 = vld [vmem:[%s0 + $0x1f8] sm:$0xff]
  %v84 = vld [vmem:[%s1] sm:$0xff]
  %v85 = vld [vmem:[%s1 + $0x8] sm:$0xff]
  %v86 = vld [vmem:[%s1 + $0x10] sm:$0xff]
  %v87 = vld [vmem:[%s1 + $0x18] sm:$0xff]
  %v88 = vld [vmem:[%s1 + $0x20] sm:$0xff]
  %v89 = vld [vmem:[%s1 + $0x28] sm:$0xff]
  %v90 = vld [vmem:[%s1 + $0x30] sm:$0xff]
  %v91 = vld [vmem:[%s1 + $0x38] sm:$0xff]
  %v92 = vld [vmem:[%s1 + $0x40] sm:$0xff]
  %v93 = vld [vmem:[%s1 + $0x48] sm:$0xff]
  %v94 = vld [vmem:[%s1 + $0x50] sm:$0xff]
  %v95 = vld [vmem:[%s1 + $0x58] sm:$0xff]
  %v96 = vld [vmem:[%s1 + $0x60] sm:$0xff]
  %v97 = vld [vmem:[%s1 + $0x68] sm:$0xf]
  %v98 = vld [vmem:[%s2] sm:$0x1]
  %v100 = vlaneseq
  %v101 = vshrl.u32 %v100, 7
  %v102 = vsub.s32 0, %v101
  %v103 = vrot.slane %v98, %v102
  %vm105 = vcmask 883712
  %v107 = vsel %vm105, %v20, 0
  %v110 = vsel %vm105, %v21, 0
  %v113 = vsel %vm105, %v22, 0
  %v116 = vsel %vm105, %v23, 0
  %v119 = vsel %vm105, %v24, 0
  %v122 = vsel %vm105, %v25, 0
  %v125 = vsel %vm105, %v26, 0
  %v128 = vsel %vm105, %v27, 0
  %v131 = vsel %vm105, %v28, 0
  %v134 = vsel %vm105, %v29, 0
  %v137 = vsel %vm105, %v30, 0
  %v140 = vsel %vm105, %v31, 0
  %v143 = vsel %vm105, %v32, 0
  %v146 = vsel %vm105, %v33, 0
  %v149 = vsel %vm105, %v34, 0
  %v152 = vsel %vm105, %v35, 0
  %v155 = vsel %vm105, %v36, 0
  %v158 = vsel %vm105, %v37, 0
  %v161 = vsel %vm105, %v38, 0
  %v164 = vsel %vm105, %v39, 0
  %v167 = vsel %vm105, %v40, 0
  %v170 = vsel %vm105, %v41, 0
  %v173 = vsel %vm105, %v42, 0
  %v176 = vsel %vm105, %v43, 0
  %v179 = vsel %vm105, %v44, 0
  %v182 = vsel %vm105, %v45, 0
  %v185 = vsel %vm105, %v46, 0
  %v188 = vsel %vm105, %v47, 0
  %v191 = vsel %vm105, %v48, 0
  %v194 = vsel %vm105, %v49, 0
  %v197 = vsel %vm105, %v50, 0
  %v200 = vsel %vm105, %v51, 0
  %v203 = vsel %vm105, %v52, 0
  %v206 = vsel %vm105, %v53, 0
  %v209 = vsel %vm105, %v54, 0
  %v212 = vsel %vm105, %v55, 0
  %v215 = vsel %vm105, %v56, 0
  %v218 = vsel %vm105, %v57, 0
  %v221 = vsel %vm105, %v58, 0
  %v224 = vsel %vm105, %v59, 0
  %v227 = vsel %vm105, %v60, 0
  %v230 = vsel %vm105, %v61, 0
  %v233 = vsel %vm105, %v62, 0
  %v236 = vsel %vm105, %v63, 0
  %v239 = vsel %vm105, %v64, 0
  %v242 = vsel %vm105, %v65, 0
  %v245 = vsel %vm105, %v66, 0
  %v248 = vsel %vm105, %v67, 0
  %v251 = vsel %vm105, %v68, 0
  %v254 = vsel %vm105, %v69, 0
  %v257 = vsel %vm105, %v70, 0
  %v260 = vsel %vm105, %v71, 0
  %v263 = vsel %vm105, %v72, 0
  %v266 = vsel %vm105, %v73, 0
  %v269 = vsel %vm105, %v74, 0
  %v272 = vsel %vm105, %v75, 0
  %v275 = vsel %vm105, %v76, 0
  %v278 = vsel %vm105, %v77, 0
  %v281 = vsel %vm105, %v78, 0
  %v284 = vsel %vm105, %v79, 0
  %v287 = vsel %vm105, %v80, 0
  %v290 = vsel %vm105, %v81, 0
  %v293 = vsel %vm105, %v82, 0
  %v296 = vsel %vm105, %v83, 0
  %vm298 = vcmask 1043456
  %v300 = vsel %vm298, %v97, 0
  %302 = vmatprep.subr.mxu0 0.0
  %303 = vmatpush1.msra.mxu0 %v84
  %304 = vmatprep.subr.mxu0 0.0
  %305 = vmatpush1.msra.mxu0 %v85
  %306 = vmatprep.subr.mxu0 0.0
  %307 = vmatpush1.msra.mxu0 %v86
  %308 = vmatprep.subr.mxu0 0.0
  %309 = vmatpush1.msra.mxu0 %v87
  %310 = vmatprep.subr.mxu0 0.0
  %311 = vmatpush1.msra.mxu0 %v88
  %312 = vmatprep.subr.mxu0 0.0
  %313 = vmatpush1.msra.mxu0 %v89
  %314 = vmatprep.subr.mxu0 0.0
  %315 = vmatpush1.msra.mxu0 %v90
  %316 = vmatprep.subr.mxu0 0.0
  %317 = vmatpush1.msra.mxu0 %v91
  %318 = vmatprep.subr.mxu0 0.0
  %319 = vmatpush1.msra.mxu0 %v92
  %320 = vmatprep.subr.mxu0 0.0
  %321 = vmatpush1.msra.mxu0 %v93
  %322 = vmatprep.subr.mxu0 0.0
  %323 = vmatpush1.msra.mxu0 %v94
  %324 = vmatprep.subr.mxu0 0.0
  %325 = vmatpush1.msra.mxu0 %v95
  %326 = vmatprep.subr.mxu0 0.0
  %327 = vmatpush1.msra.mxu0 %v96
  %328 = vmatprep.subr.mxu0 0.0
  %329 = vmatpush1.msra.mxu0 %v300
  %330 = vmatprep.subr.mxu0 0.0
  %331 = vmatpush1.msra.mxu0 0.0
  %332 = vmatprep.subr.mxu0 0.0
  %333 = vmatpush1.msra.mxu0 0.0
  %334 = vmatprep.subr.mxu0 0.0
  %335 = vmatpush1.msra.mxu0 0.0
  %336 = vmatprep.subr.mxu0 0.0
  %337 = vmatpush1.msra.mxu0 0.0
  %338 = vmatprep.subr.mxu0 0.0
  %339 = vmatpush1.msra.mxu0 0.0
  %340 = vmatprep.subr.mxu0 0.0
  %341 = vmatpush1.msra.mxu0 0.0
  %342 = vmatprep.subr.mxu0 0.0
  %343 = vmatpush1.msra.mxu0 0.0
  %344 = vmatprep.subr.mxu0 0.0
  %345 = vmatpush1.msra.mxu0 0.0
  %346 = vmatprep.subr.mxu0 0.0
  %347 = vmatpush1.msra.mxu0 0.0
  %348 = vmatprep.subr.mxu0 0.0
  %349 = vmatpush1.msra.mxu0 0.0
  %350 = vmatprep.subr.mxu0 0.0
  %351 = vmatpush1.msra.mxu0 0.0
  %352 = vmatprep.subr.mxu0 0.0
  %353 = vmatpush1.msra.mxu0 0.0
  %354 = vmatprep.subr.mxu0 0.0
  %355 = vmatpush1.msra.mxu0 0.0
  %356 = vmatprep.subr.mxu0 0.0
  %357 = vmatpush1.msra.mxu0 0.0
  %358 = vmatprep.subr.mxu0 0.0
  %359 = vmatpush1.msra.mxu0 0.0
  %360 = vmatprep.subr.mxu0 0.0
  %361 = vmatpush1.msra.mxu0 0.0
  %362 = vmatprep.subr.mxu0 0.0
  %363 = vmatpush1.msra.mxu0 0.0
  %364 = vmatprep.subr.mxu0 0.0
  %365 = vmatpush1.msra.mxu0 0.0
  %366 = vmatprep.mubr.f32.mxu0 0.0
  %367 = vmatmul.mubr.f32.gmra.mrb[0].mxu0 %v107
  %v368 = vpop.f32.mrb[0].mxu0
  %v369 = vadd.f32 %v103, %v368
  %v370 = vpop.f32.mrb[0].mxu0
  %371 = vmatprep.mubr.f32.mxu0 0.0
  %372 = vmatmul.mubr.f32.gmra.mrb[0].mxu0 %v110
  %v373 = vpop.f32.mrb[0].mxu0
  %v374 = vadd.f32 %v103, %v373
  %v375 = vpop.f32.mrb[0].mxu0
  %376 = vmatprep.mubr.f32.mxu0 0.0
  %377 = vmatmul.mubr.f32.gmra.mrb[0].mxu0 %v113
  %v378 = vpop.f32.mrb[0].mxu0
  %v379 = vadd.f32 %v103, %v378
  %v380 = vpop.f32.mrb[0].mxu0
  %381 = vmatprep.mubr.f32.mxu0 0.0
  %382 = vmatmul.mubr.f32.gmra.mrb[0].mxu0 %v116
  %v383 = vpop.f32.mrb[0].mxu0
  %v384 = vadd.f32 %v103, %v383
  %v385 = vpop.f32.mrb[0].mxu0
  %386 = vmatprep.mubr.f32.mxu0 0.0
  %387 = vmatmul.mubr.f32.gmra.mrb[0].mxu0 %v119
  %v388 = vpop.f32.mrb[0].mxu0
  %v389 = vadd.f32 %v103, %v388
  %v390 = vpop.f32.mrb[0].mxu0
  %391 = vmatprep.mubr.f32.mxu0 0.0
  %392 = vmatmul.mubr.f32.gmra.mrb[0].mxu0 %v122
  %v393 = vpop.f32.mrb[0].mxu0
  %v394 = vadd.f32 %v103, %v393
  %v395 = vpop.f32.mrb[0].mxu0
  %396 = vmatprep.mubr.f32.mxu0 0.0
  %397 = vmatmul.mubr.f32.gmra.mrb[0].mxu0 %v125
  %v398 = vpop.f32.mrb[0].mxu0
  %v399 = vadd.f32 %v103, %v398
  %v400 = vpop.f32.mrb[0].mxu0
  %401 = vmatprep.mubr.f32.mxu0 0.0
  %402 = vmatmul.mubr.f32.gmra.mrb[0].mxu0 %v128
  %v403 = vpop.f32.mrb[0].mxu0
  %v404 = vadd.f32 %v103, %v403
  %v405 = vpop.f32.mrb[0].mxu0
  %406 = vmatprep.mubr.f32.mxu0 0.0
  %407 = vmatmul.mubr.f32.gmra.mrb[0].mxu0 %v131
  %v408 = vpop.f32.mrb[0].mxu0
  %v409 = vadd.f32 %v103, %v408
  %v410 = vpop.f32.mrb[0].mxu0
  %411 = vmatprep.mubr.f32.mxu0 0.0
  %412 = vmatmul.mubr.f32.gmra.mrb[0].mxu0 %v134
  %v413 = vpop.f32.mrb[0].mxu0
  %v414 = vadd.f32 %v103, %v413
  %v415 = vpop.f32.mrb[0].mxu0
  %416 = vmatprep.mubr.f32.mxu0 0.0
  %417 = vmatmul.mubr.f32.gmra.mrb[0].mxu0 %v137
  %v418 = vpop.f32.mrb[0].mxu0
  %v419 = vadd.f32 %v103, %v418
  %v420 = vpop.f32.mrb[0].mxu0
  %421 = vmatprep.mubr.f32.mxu0 0.0
  %422 = vmatmul.mubr.f32.gmra.mrb[0].mxu0 %v140
  %v423 = vpop.f32.mrb[0].mxu0
  %v424 = vadd.f32 %v103, %v423
  %v425 = vpop.f32.mrb[0].mxu0
  %426 = vmatprep.mubr.f32.mxu0 0.0
  %427 = vmatmul.mubr.f32.gmra.mrb[0].mxu0 %v143
  %v428 = vpop.f32.mrb[0].mxu0
  %v429 = vadd.f32 %v103, %v428
  %v430 = vpop.f32.mrb[0].mxu0
  %431 = vmatprep.mubr.f32.mxu0 0.0
  %432 = vmatmul.mubr.f32.gmra.mrb[0].mxu0 %v146
  %v433 = vpop.f32.mrb[0].mxu0
  %v434 = vadd.f32 %v103, %v433
  %v435 = vpop.f32.mrb[0].mxu0
  %436 = vmatprep.mubr.f32.mxu0 0.0
  %437 = vmatmul.mubr.f32.gmra.mrb[0].mxu0 %v149
  %v438 = vpop.f32.mrb[0].mxu0
  %v439 = vadd.f32 %v103, %v438
  %v440 = vpop.f32.mrb[0].mxu0
  %441 = vmatprep.mubr.f32.mxu0 0.0
  %442 = vmatmul.mubr.f32.gmra.mrb[0].mxu0 %v152
  %v443 = vpop.f32.mrb[0].mxu0
  %v444 = vadd.f32 %v103, %v443
  %v445 = vpop.f32.mrb[0].mxu0
  %446 = vmatprep.mubr.f32.mxu0 0.0
  %447 = vmatmul.mubr.f32.gmra.mrb[0].mxu0 %v155
  %v448 = vpop.f32.mrb[0].mxu0
  %v449 = vadd.f32 %v103, %v448
  %v450 = vpop.f32.mrb[0].mxu0
  %451 = vmatprep.mubr.f32.mxu0 0.0
  %452 = vmatmul.mubr.f32.gmra.mrb[0].mxu0 %v158
  %v453 = vpop.f32.mrb[0].mxu0
  %v454 = vadd.f32 %v103, %v453
  %v455 = vpop.f32.mrb[0].mxu0
  %456 = vmatprep.mubr.f32.mxu0 0.0
  %457 = vmatmul.mubr.f32.gmra.mrb[0].mxu0 %v161
  %v458 = vpop.f32.mrb[0].mxu0
  %v459 = vadd.f32 %v103, %v458
  %v460 = vpop.f32.mrb[0].mxu0
  %461 = vmatprep.mubr.f32.mxu0 0.0
  %462 = vmatmul.mubr.f32.gmra.mrb[0].mxu0 %v164
  %v463 = vpop.f32.mrb[0].mxu0
  %v464 = vadd.f32 %v103, %v463
  %v465 = vpop.f32.mrb[0].mxu0
  %466 = vmatprep.mubr.f32.mxu0 0.0
  %467 = vmatmul.mubr.f32.gmra.mrb[0].mxu0 %v167
  %v468 = vpop.f32.mrb[0].mxu0
  %v469 = vadd.f32 %v103, %v468
  %v470 = vpop.f32.mrb[0].mxu0
  %471 = vmatprep.mubr.f32.mxu0 0.0
  %472 = vmatmul.mubr.f32.gmra.mrb[0].mxu0 %v170
  %v473 = vpop.f32.mrb[0].mxu0
  %v474 = vadd.f32 %v103, %v473
  %v475 = vpop.f32.mrb[0].mxu0
  %476 = vmatprep.mubr.f32.mxu0 0.0
  %477 = vmatmul.mubr.f32.gmra.mrb[0].mxu0 %v173
  %v478 = vpop.f32.mrb[0].mxu0
  %v479 = vadd.f32 %v103, %v478
  %v480 = vpop.f32.mrb[0].mxu0
  %481 = vmatprep.mubr.f32.mxu0 0.0
  %482 = vmatmul.mubr.f32.gmra.mrb[0].mxu0 %v176
  %v483 = vpop.f32.mrb[0].mxu0
  %v484 = vadd.f32 %v103, %v483
  %v485 = vpop.f32.mrb[0].mxu0
  %486 = vmatprep.mubr.f32.mxu0 0.0
  %487 = vmatmul.mubr.f32.gmra.mrb[0].mxu0 %v179
  %v488 = vpop.f32.mrb[0].mxu0
  %v489 = vadd.f32 %v103, %v488
  %v490 = vpop.f32.mrb[0].mxu0
  %491 = vmatprep.mubr.f32.mxu0 0.0
  %492 = vmatmul.mubr.f32.gmra.mrb[0].mxu0 %v182
  %v493 = vpop.f32.mrb[0].mxu0
  %v494 = vadd.f32 %v103, %v493
  %v495 = vpop.f32.mrb[0].mxu0
  %496 = vmatprep.mubr.f32.mxu0 0.0
  %497 = vmatmul.mubr.f32.gmra.mrb[0].mxu0 %v185
  %v498 = vpop.f32.mrb[0].mxu0
  %v499 = vadd.f32 %v103, %v498
  %v500 = vpop.f32.mrb[0].mxu0
  %501 = vmatprep.mubr.f32.mxu0 0.0
  %502 = vmatmul.mubr.f32.gmra.mrb[0].mxu0 %v188
  %v503 = vpop.f32.mrb[0].mxu0
  %v504 = vadd.f32 %v103, %v503
  %v505 = vpop.f32.mrb[0].mxu0
  %506 = vmatprep.mubr.f32.mxu0 0.0
  %507 = vmatmul.mubr.f32.gmra.mrb[0].mxu0 %v191
  %v508 = vpop.f32.mrb[0].mxu0
  %v509 = vadd.f32 %v103, %v508
  %v510 = vpop.f32.mrb[0].mxu0
  %511 = vmatprep.mubr.f32.mxu0 0.0
  %512 = vmatmul.mubr.f32.gmra.mrb[0].mxu0 %v194
  %v513 = vpop.f32.mrb[0].mxu0
  %v514 = vadd.f32 %v103, %v513
  %v515 = vpop.f32.mrb[0].mxu0
  %516 = vmatprep.mubr.f32.mxu0 0.0
  %517 = vmatmul.mubr.f32.gmra.mrb[0].mxu0 %v197
  %v518 = vpop.f32.mrb[0].mxu0
  %v519 = vadd.f32 %v103, %v518
  %v520 = vpop.f32.mrb[0].mxu0
  %521 = vmatprep.mubr.f32.mxu0 0.0
  %522 = vmatmul.mubr.f32.gmra.mrb[0].mxu0 %v200
  %v523 = vpop.f32.mrb[0].mxu0
  %v524 = vadd.f32 %v103, %v523
  %v525 = vpop.f32.mrb[0].mxu0
  %526 = vmatprep.mubr.f32.mxu0 0.0
  %527 = vmatmul.mubr.f32.gmra.mrb[0].mxu0 %v203
  %v528 = vpop.f32.mrb[0].mxu0
  %v529 = vadd.f32 %v103, %v528
  %v530 = vpop.f32.mrb[0].mxu0
  %531 = vmatprep.mubr.f32.mxu0 0.0
  %532 = vmatmul.mubr.f32.gmra.mrb[0].mxu0 %v206
  %v533 = vpop.f32.mrb[0].mxu0
  %v534 = vadd.f32 %v103, %v533
  %v535 = vpop.f32.mrb[0].mxu0
  %536 = vmatprep.mubr.f32.mxu0 0.0
  %537 = vmatmul.mubr.f32.gmra.mrb[0].mxu0 %v209
  %v538 = vpop.f32.mrb[0].mxu0
  %v539 = vadd.f32 %v103, %v538
  %v540 = vpop.f32.mrb[0].mxu0
  %541 = vmatprep.mubr.f32.mxu0 0.0
  %542 = vmatmul.mubr.f32.gmra.mrb[0].mxu0 %v212
  %v543 = vpop.f32.mrb[0].mxu0
  %v544 = vadd.f32 %v103, %v543
  %v545 = vpop.f32.mrb[0].mxu0
  %546 = vmatprep.mubr.f32.mxu0 0.0
  %547 = vmatmul.mubr.f32.gmra.mrb[0].mxu0 %v215
  %v548 = vpop.f32.mrb[0].mxu0
  %v549 = vadd.f32 %v103, %v548
  %v550 = vpop.f32.mrb[0].mxu0
  %551 = vmatprep.mubr.f32.mxu0 0.0
  %552 = vmatmul.mubr.f32.gmra.mrb[0].mxu0 %v218
  %v553 = vpop.f32.mrb[0].mxu0
  %v554 = vadd.f32 %v103, %v553
  %v555 = vpop.f32.mrb[0].mxu0
  %556 = vmatprep.mubr.f32.mxu0 0.0
  %557 = vmatmul.mubr.f32.gmra.mrb[0].mxu0 %v221
  %v558 = vpop.f32.mrb[0].mxu0
  %v559 = vadd.f32 %v103, %v558
  %v560 = vpop.f32.mrb[0].mxu0
  %561 = vmatprep.mubr.f32.mxu0 0.0
  %562 = vmatmul.mubr.f32.gmra.mrb[0].mxu0 %v224
  %v563 = vpop.f32.mrb[0].mxu0
  %v564 = vadd.f32 %v103, %v563
  %v565 = vpop.f32.mrb[0].mxu0
  %566 = vmatprep.mubr.f32.mxu0 0.0
  %567 = vmatmul.mubr.f32.gmra.mrb[0].mxu0 %v227
  %v568 = vpop.f32.mrb[0].mxu0
  %v569 = vadd.f32 %v103, %v568
  %v570 = vpop.f32.mrb[0].mxu0
  %571 = vmatprep.mubr.f32.mxu0 0.0
  %572 = vmatmul.mubr.f32.gmra.mrb[0].mxu0 %v230
  %v573 = vpop.f32.mrb[0].mxu0
  %v574 = vadd.f32 %v103, %v573
  %v575 = vpop.f32.mrb[0].mxu0
  %576 = vmatprep.mubr.f32.mxu0 0.0
  %577 = vmatmul.mubr.f32.gmra.mrb[0].mxu0 %v233
  %v578 = vpop.f32.mrb[0].mxu0
  %v579 = vadd.f32 %v103, %v578
  %v580 = vpop.f32.mrb[0].mxu0
  %581 = vmatprep.mubr.f32.mxu0 0.0
  %582 = vmatmul.mubr.f32.gmra.mrb[0].mxu0 %v236
  %v583 = vpop.f32.mrb[0].mxu0
  %v584 = vadd.f32 %v103, %v583
  %v585 = vpop.f32.mrb[0].mxu0
  %586 = vmatprep.mubr.f32.mxu0 0.0
  %587 = vmatmul.mubr.f32.gmra.mrb[0].mxu0 %v239
  %v588 = vpop.f32.mrb[0].mxu0
  %v589 = vadd.f32 %v103, %v588
  %v590 = vpop.f32.mrb[0].mxu0
  %591 = vmatprep.mubr.f32.mxu0 0.0
  %592 = vmatmul.mubr.f32.gmra.mrb[0].mxu0 %v242
  %v593 = vpop.f32.mrb[0].mxu0
  %v594 = vadd.f32 %v103, %v593
  %v595 = vpop.f32.mrb[0].mxu0
  %596 = vmatprep.mubr.f32.mxu0 0.0
  %597 = vmatmul.mubr.f32.gmra.mrb[0].mxu0 %v245
  %v598 = vpop.f32.mrb[0].mxu0
  %v599 = vadd.f32 %v103, %v598
  %v600 = vpop.f32.mrb[0].mxu0
  %601 = vmatprep.mubr.f32.mxu0 0.0
  %602 = vmatmul.mubr.f32.gmra.mrb[0].mxu0 %v248
  %v603 = vpop.f32.mrb[0].mxu0
  %v604 = vadd.f32 %v103, %v603
  %v605 = vpop.f32.mrb[0].mxu0
  %606 = vmatprep.mubr.f32.mxu0 0.0
  %607 = vmatmul.mubr.f32.gmra.mrb[0].mxu0 %v251
  %v608 = vpop.f32.mrb[0].mxu0
  %v609 = vadd.f32 %v103, %v608
  %v610 = vpop.f32.mrb[0].mxu0
  %611 = vmatprep.mubr.f32.mxu0 0.0
  %612 = vmatmul.mubr.f32.gmra.mrb[0].mxu0 %v254
  %v613 = vpop.f32.mrb[0].mxu0
  %v614 = vadd.f32 %v103, %v613
  %v615 = vpop.f32.mrb[0].mxu0
  %616 = vmatprep.mubr.f32.mxu0 0.0
  %617 = vmatmul.mubr.f32.gmra.mrb[0].mxu0 %v257
  %v618 = vpop.f32.mrb[0].mxu0
  %v619 = vadd.f32 %v103, %v618
  %v620 = vpop.f32.mrb[0].mxu0
  %621 = vmatprep.mubr.f32.mxu0 0.0
  %622 = vmatmul.mubr.f32.gmra.mrb[0].mxu0 %v260
  %v623 = vpop.f32.mrb[0].mxu0
  %v624 = vadd.f32 %v103, %v623
  %v625 = vpop.f32.mrb[0].mxu0
  %626 = vmatprep.mubr.f32.mxu0 0.0
  %627 = vmatmul.mubr.f32.gmra.mrb[0].mxu0 %v263
  %v628 = vpop.f32.mrb[0].mxu0
  %v629 = vadd.f32 %v103, %v628
  %v630 = vpop.f32.mrb[0].mxu0
  %631 = vmatprep.mubr.f32.mxu0 0.0
  %632 = vmatmul.mubr.f32.gmra.mrb[0].mxu0 %v266
  %v633 = vpop.f32.mrb[0].mxu0
  %v634 = vadd.f32 %v103, %v633
  %v635 = vpop.f32.mrb[0].mxu0
  %636 = vmatprep.mubr.f32.mxu0 0.0
  %637 = vmatmul.mubr.f32.gmra.mrb[0].mxu0 %v269
  %v638 = vpop.f32.mrb[0].mxu0
  %v639 = vadd.f32 %v103, %v638
  %v640 = vpop.f32.mrb[0].mxu0
  %641 = vmatprep.mubr.f32.mxu0 0.0
  %642 = vmatmul.mubr.f32.gmra.mrb[0].mxu0 %v272
  %v643 = vpop.f32.mrb[0].mxu0
  %v644 = vadd.f32 %v103, %v643
  %v645 = vpop.f32.mrb[0].mxu0
  %646 = vmatprep.mubr.f32.mxu0 0.0
  %647 = vmatmul.mubr.f32.gmra.mrb[0].mxu0 %v275
  %v648 = vpop.f32.mrb[0].mxu0
  %v649 = vadd.f32 %v103, %v648
  %v650 = vpop.f32.mrb[0].mxu0
  %651 = vmatprep.mubr.f32.mxu0 0.0
  %652 = vmatmul.mubr.f32.gmra.mrb[0].mxu0 %v278
  %v653 = vpop.f32.mrb[0].mxu0
  %v654 = vadd.f32 %v103, %v653
  %v655 = vpop.f32.mrb[0].mxu0
  %656 = vmatprep.mubr.f32.mxu0 0.0
  %657 = vmatmul.mubr.f32.gmra.mrb[0].mxu0 %v281
  %v658 = vpop.f32.mrb[0].mxu0
  %v659 = vadd.f32 %v103, %v658
  %v660 = vpop.f32.mrb[0].mxu0
  %661 = vmatprep.mubr.f32.mxu0 0.0
  %662 = vmatmul.mubr.f32.gmra.mrb[0].mxu0 %v284
  %v663 = vpop.f32.mrb[0].mxu0
  %v664 = vadd.f32 %v103, %v663
  %v665 = vpop.f32.mrb[0].mxu0
  %666 = vmatprep.mubr.f32.mxu0 0.0
  %667 = vmatmul.mubr.f32.gmra.mrb[0].mxu0 %v287
  %v668 = vpop.f32.mrb[0].mxu0
  %v669 = vadd.f32 %v103, %v668
  %v670 = vpop.f32.mrb[0].mxu0
  %671 = vmatprep.mubr.f32.mxu0 0.0
  %672 = vmatmul.mubr.f32.gmra.mrb[0].mxu0 %v290
  %v673 = vpop.f32.mrb[0].mxu0
  %v674 = vadd.f32 %v103, %v673
  %v675 = vpop.f32.mrb[0].mxu0
  %676 = vmatprep.mubr.f32.mxu0 0.0
  %677 = vmatmul.mubr.f32.gmra.mrb[0].mxu0 %v293
  %v678 = vpop.f32.mrb[0].mxu0
  %v679 = vadd.f32 %v103, %v678
  %v680 = vpop.f32.mrb[0].mxu0
  %681 = vmatprep.mubr.f32.mxu0 0.0
  %682 = vmatmul.mubr.f32.gmra.mrb[0].mxu0 %v296
  %v683 = vpop.f32.mrb[0].mxu0
  %v684 = vadd.f32 %v103, %v683
  %v685 = vpop.f32.mrb[0].mxu0
  %686 = vdwg.mxu0
  %vm687 = vcmask 64512
  %v688 = vsel %vm687, %v369, 0.0
  %v689 = vsel %vm687, %v374, 0.0
  %v690 = vadd.f32 %v688, %v689
  %v691 = vsel %vm687, %v379, 0.0
  %v692 = vadd.f32 %v690, %v691
  %v693 = vsel %vm687, %v384, 0.0
  %v694 = vadd.f32 %v692, %v693
  %v695 = vsel %vm687, %v389, 0.0
  %v696 = vadd.f32 %v694, %v695
  %v697 = vsel %vm687, %v394, 0.0
  %v698 = vadd.f32 %v696, %v697
  %v699 = vsel %vm687, %v399, 0.0
  %v700 = vadd.f32 %v698, %v699
  %v701 = vsel %vm687, %v404, 0.0
  %v702 = vadd.f32 %v700, %v701
  %v703 = vsel %vm687, %v409, 0.0
  %v704 = vadd.f32 %v702, %v703
  %v705 = vsel %vm687, %v414, 0.0
  %v706 = vadd.f32 %v704, %v705
  %v707 = vsel %vm687, %v419, 0.0
  %v708 = vadd.f32 %v706, %v707
  %v709 = vsel %vm687, %v424, 0.0
  %v710 = vadd.f32 %v708, %v709
  %v711 = vsel %vm687, %v429, 0.0
  %v712 = vadd.f32 %v710, %v711
  %v713 = vsel %vm687, %v434, 0.0
  %v714 = vadd.f32 %v712, %v713
  %v715 = vsel %vm687, %v439, 0.0
  %v716 = vadd.f32 %v714, %v715
  %v717 = vsel %vm687, %v444, 0.0
  %v718 = vadd.f32 %v716, %v717
  %v719 = vsel %vm687, %v449, 0.0
  %v720 = vadd.f32 %v718, %v719
  %v721 = vsel %vm687, %v454, 0.0
  %v722 = vadd.f32 %v720, %v721
  %v723 = vsel %vm687, %v459, 0.0
  %v724 = vadd.f32 %v722, %v723
  %v725 = vsel %vm687, %v464, 0.0
  %v726 = vadd.f32 %v724, %v725
  %v727 = vsel %vm687, %v469, 0.0
  %v728 = vadd.f32 %v726, %v727
  %v729 = vsel %vm687, %v474, 0.0
  %v730 = vadd.f32 %v728, %v729
  %v731 = vsel %vm687, %v479, 0.0
  %v732 = vadd.f32 %v730, %v731
  %v733 = vsel %vm687, %v484, 0.0
  %v734 = vadd.f32 %v732, %v733
  %v735 = vsel %vm687, %v489, 0.0
  %v736 = vadd.f32 %v734, %v735
  %v737 = vsel %vm687, %v494, 0.0
  %v738 = vadd.f32 %v736, %v737
  %v739 = vsel %vm687, %v499, 0.0
  %v740 = vadd.f32 %v738, %v739
  %v741 = vsel %vm687, %v504, 0.0
  %v742 = vadd.f32 %v740, %v741
  %v743 = vsel %vm687, %v509, 0.0
  %v744 = vadd.f32 %v742, %v743
  %v745 = vsel %vm687, %v514, 0.0
  %v746 = vadd.f32 %v744, %v745
  %v747 = vsel %vm687, %v519, 0.0
  %v748 = vadd.f32 %v746, %v747
  %v749 = vsel %vm687, %v524, 0.0
  %v750 = vadd.f32 %v748, %v749
  %v751 = vsel %vm687, %v529, 0.0
  %v752 = vadd.f32 %v750, %v751
  %v753 = vsel %vm687, %v534, 0.0
  %v754 = vadd.f32 %v752, %v753
  %v755 = vsel %vm687, %v539, 0.0
  %v756 = vadd.f32 %v754, %v755
  %v757 = vsel %vm687, %v544, 0.0
  %v758 = vadd.f32 %v756, %v757
  %v759 = vsel %vm687, %v549, 0.0
  %v760 = vadd.f32 %v758, %v759
  %v761 = vsel %vm687, %v554, 0.0
  %v762 = vadd.f32 %v760, %v761
  %v763 = vsel %vm687, %v559, 0.0
  %v764 = vadd.f32 %v762, %v763
  %v765 = vsel %vm687, %v564, 0.0
  %v766 = vadd.f32 %v764, %v765
  %v767 = vsel %vm687, %v569, 0.0
  %v768 = vadd.f32 %v766, %v767
  %v769 = vsel %vm687, %v574, 0.0
  %v770 = vadd.f32 %v768, %v769
  %v771 = vsel %vm687, %v579, 0.0
  %v772 = vadd.f32 %v770, %v771
  %v773 = vsel %vm687, %v584, 0.0
  %v774 = vadd.f32 %v772, %v773
  %v775 = vsel %vm687, %v589, 0.0
  %v776 = vadd.f32 %v774, %v775
  %v777 = vsel %vm687, %v594, 0.0
  %v778 = vadd.f32 %v776, %v777
  %v779 = vsel %vm687, %v599, 0.0
  %v780 = vadd.f32 %v778, %v779
  %v781 = vsel %vm687, %v604, 0.0
  %v782 = vadd.f32 %v780, %v781
  %v783 = vsel %vm687, %v609, 0.0
  %v784 = vadd.f32 %v782, %v783
  %v785 = vsel %vm687, %v614, 0.0
  %v786 = vadd.f32 %v784, %v785
  %v787 = vsel %vm687, %v619, 0.0
  %v788 = vadd.f32 %v786, %v787
  %v789 = vsel %vm687, %v624, 0.0
  %v790 = vadd.f32 %v788, %v789
  %v791 = vsel %vm687, %v629, 0.0
  %v792 = vadd.f32 %v790, %v791
  %v793 = vsel %vm687, %v634, 0.0
  %v794 = vadd.f32 %v792, %v793
  %v795 = vsel %vm687, %v639, 0.0
  %v796 = vadd.f32 %v794, %v795
  %v797 = vsel %vm687, %v644, 0.0
  %v798 = vadd.f32 %v796, %v797
  %v799 = vsel %vm687, %v649, 0.0
  %v800 = vadd.f32 %v798, %v799
  %v801 = vsel %vm687, %v654, 0.0
  %v802 = vadd.f32 %v800, %v801
  %v803 = vsel %vm687, %v659, 0.0
  %v804 = vadd.f32 %v802, %v803
  %v805 = vsel %vm687, %v664, 0.0
  %v806 = vadd.f32 %v804, %v805
  %v807 = vsel %vm687, %v669, 0.0
  %v808 = vadd.f32 %v806, %v807
  %v809 = vsel %vm687, %v674, 0.0
  %v810 = vadd.f32 %v808, %v809
  %v811 = vsel %vm687, %v679, 0.0
  %v812 = vadd.f32 %v810, %v811
  %v813 = vsel %vm687, %v684, 0.0
  %v814 = vadd.f32 %v812, %v813
  %v815 = vrot.slane %v814, 4
  %v816 = vadd.f32 %v814, %v815
  %v817 = vrot.slane %v816, 2
  %v818 = vadd.f32 %v816, %v817
  %v819 = vrot.slane %v818, 1
  %v820 = vadd.f32 %v818, %v819
  %v821 = vrcp.pop 512.0
  %v822 = vmul.f32 %v820, %v821
  %v823 = vsub.f32 %v369, %v822
  %v824 = vsub.f32 %v374, %v822
  %v825 = vsub.f32 %v379, %v822
  %v826 = vsub.f32 %v384, %v822
  %v827 = vsub.f32 %v389, %v822
  %v828 = vsub.f32 %v394, %v822
  %v829 = vsub.f32 %v399, %v822
  %v830 = vsub.f32 %v404, %v822
  %v831 = vsub.f32 %v409, %v822
  %v832 = vsub.f32 %v414, %v822
  %v833 = vsub.f32 %v419, %v822
  %v834 = vsub.f32 %v424, %v822
  %v835 = vsub.f32 %v429, %v822
  %v836 = vsub.f32 %v434, %v822
  %v837 = vsub.f32 %v439, %v822
  %v838 = vsub.f32 %v444, %v822
  %v839 = vsub.f32 %v449, %v822
  %v840 = vsub.f32 %v454, %v822
  %v841 = vsub.f32 %v459, %v822
  %v842 = vsub.f32 %v464, %v822
  %v843 = vsub.f32 %v469, %v822
  %v844 = vsub.f32 %v474, %v822
  %v845 = vsub.f32 %v479, %v822
  %v846 = vsub.f32 %v484, %v822
  %v847 = vsub.f32 %v489, %v822
  %v848 = vsub.f32 %v494, %v822
  %v849 = vsub.f32 %v499, %v822
  %v850 = vsub.f32 %v504, %v822
  %v851 = vsub.f32 %v509, %v822
  %v852 = vsub.f32 %v514, %v822
  %v853 = vsub.f32 %v519, %v822
  %v854 = vsub.f32 %v524, %v822
  %v855 = vsub.f32 %v529, %v822
  %v856 = vsub.f32 %v534, %v822
  %v857 = vsub.f32 %v539, %v822
  %v858 = vsub.f32 %v544, %v822
  %v859 = vsub.f32 %v549, %v822
  %v860 = vsub.f32 %v554, %v822
  %v861 = vsub.f32 %v559, %v822
  %v862 = vsub.f32 %v564, %v822
  %v863 = vsub.f32 %v569, %v822
  %v864 = vsub.f32 %v574, %v822
  %v865 = vsub.f32 %v579, %v822
  %v866 = vsub.f32 %v584, %v822
  %v867 = vsub.f32 %v589, %v822
  %v868 = vsub.f32 %v594, %v822
  %v869 = vsub.f32 %v599, %v822
  %v870 = vsub.f32 %v604, %v822
  %v871 = vsub.f32 %v609, %v822
  %v872 = vsub.f32 %v614, %v822
  %v873 = vsub.f32 %v619, %v822
  %v874 = vsub.f32 %v624, %v822
  %v875 = vsub.f32 %v629, %v822
  %v876 = vsub.f32 %v634, %v822
  %v877 = vsub.f32 %v639, %v822
  %v878 = vsub.f32 %v644, %v822
  %v879 = vsub.f32 %v649, %v822
  %v880 = vsub.f32 %v654, %v822
  %v881 = vsub.f32 %v659, %v822
  %v882 = vsub.f32 %v664, %v822
  %v883 = vsub.f32 %v669, %v822
  %v884 = vsub.f32 %v674, %v822
  %v885 = vsub.f32 %v679, %v822
  %v886 = vsub.f32 %v684, %v822
  %v887 = vmul.f32 %v823, %v823
  %v888 = vmul.f32 %v824, %v824
  %v889 = vmul.f32 %v825, %v825
  %v890 = vmul.f32 %v826, %v826
  %v891 = vmul.f32 %v827, %v827
  %v892 = vmul.f32 %v828, %v828
  %v893 = vmul.f32 %v829, %v829
  %v894 = vmul.f32 %v830, %v830
  %v895 = vmul.f32 %v831, %v831
  %v896 = vmul.f32 %v832, %v832
  %v897 = vmul.f32 %v833, %v833
  %v898 = vmul.f32 %v834, %v834
  %v899 = vmul.f32 %v835, %v835
  %v900 = vmul.f32 %v836, %v836
  %v901 = vmul.f32 %v837, %v837
  %v902 = vmul.f32 %v838, %v838
  %v903 = vmul.f32 %v839, %v839
  %v904 = vmul.f32 %v840, %v840
  %v905 = vmul.f32 %v841, %v841
  %v906 = vmul.f32 %v842, %v842
  %v907 = vmul.f32 %v843, %v843
  %v908 = vmul.f32 %v844, %v844
  %v909 = vmul.f32 %v845, %v845
  %v910 = vmul.f32 %v846, %v846
  %v911 = vmul.f32 %v847, %v847
  %v912 = vmul.f32 %v848, %v848
  %v913 = vmul.f32 %v849, %v849
  %v914 = vmul.f32 %v850, %v850
  %v915 = vmul.f32 %v851, %v851
  %v916 = vmul.f32 %v852, %v852
  %v917 = vmul.f32 %v853, %v853
  %v918 = vmul.f32 %v854, %v854
  %v919 = vmul.f32 %v855, %v855
  %v920 = vmul.f32 %v856, %v856
  %v921 = vmul.f32 %v857, %v857
  %v922 = vmul.f32 %v858, %v858
  %v923 = vmul.f32 %v859, %v859
  %v924 = vmul.f32 %v860, %v860
  %v925 = vmul.f32 %v861, %v861
  %v926 = vmul.f32 %v862, %v862
  %v927 = vmul.f32 %v863, %v863
  %v928 = vmul.f32 %v864, %v864
  %v929 = vmul.f32 %v865, %v865
  %v930 = vmul.f32 %v866, %v866
  %v931 = vmul.f32 %v867, %v867
  %v932 = vmul.f32 %v868, %v868
  %v933 = vmul.f32 %v869, %v869
  %v934 = vmul.f32 %v870, %v870
  %v935 = vmul.f32 %v871, %v871
  %v936 = vmul.f32 %v872, %v872
  %v937 = vmul.f32 %v873, %v873
  %v938 = vmul.f32 %v874, %v874
  %v939 = vmul.f32 %v875, %v875
  %v940 = vmul.f32 %v876, %v876
  %v941 = vmul.f32 %v877, %v877
  %v942 = vmul.f32 %v878, %v878
  %v943 = vmul.f32 %v879, %v879
  %v944 = vmul.f32 %v880, %v880
  %v945 = vmul.f32 %v881, %v881
  %v946 = vmul.f32 %v882, %v882
  %v947 = vmul.f32 %v883, %v883
  %v948 = vmul.f32 %v884, %v884
  %v949 = vmul.f32 %v885, %v885
  %v950 = vmul.f32 %v886, %v886
  %v951 = vsel %vm687, %v887, 0.0
  %v952 = vsel %vm687, %v888, 0.0
  %v953 = vadd.f32 %v951, %v952
  %v954 = vsel %vm687, %v889, 0.0
  %v955 = vadd.f32 %v953, %v954
  %v956 = vsel %vm687, %v890, 0.0
  %v957 = vadd.f32 %v955, %v956
  %v958 = vsel %vm687, %v891, 0.0
  %v959 = vadd.f32 %v957, %v958
  %v960 = vsel %vm687, %v892, 0.0
  %v961 = vadd.f32 %v959, %v960
  %v962 = vsel %vm687, %v893, 0.0
  %v963 = vadd.f32 %v961, %v962
  %v964 = vsel %vm687, %v894, 0.0
  %v965 = vadd.f32 %v963, %v964
  %v966 = vsel %vm687, %v895, 0.0
  %v967 = vadd.f32 %v965, %v966
  %v968 = vsel %vm687, %v896, 0.0
  %v969 = vadd.f32 %v967, %v968
  %v970 = vsel %vm687, %v897, 0.0
  %v971 = vadd.f32 %v969, %v970
  %v972 = vsel %vm687, %v898, 0.0
  %v973 = vadd.f32 %v971, %v972
  %v974 = vsel %vm687, %v899, 0.0
  %v975 = vadd.f32 %v973, %v974
  %v976 = vsel %vm687, %v900, 0.0
  %v977 = vadd.f32 %v975, %v976
  %v978 = vsel %vm687, %v901, 0.0
  %v979 = vadd.f32 %v977, %v978
  %v980 = vsel %vm687, %v902, 0.0
  %v981 = vadd.f32 %v979, %v980
  %v982 = vsel %vm687, %v903, 0.0
  %v983 = vadd.f32 %v981, %v982
  %v984 = vsel %vm687, %v904, 0.0
  %v985 = vadd.f32 %v983, %v984
  %v986 = vsel %vm687, %v905, 0.0
  %v987 = vadd.f32 %v985, %v986
  %v988 = vsel %vm687, %v906, 0.0
  %v989 = vadd.f32 %v987, %v988
  %v990 = vsel %vm687, %v907, 0.0
  %v991 = vadd.f32 %v989, %v990
  %v992 = vsel %vm687, %v908, 0.0
  %v993 = vadd.f32 %v991, %v992
  %v994 = vsel %vm687, %v909, 0.0
  %v995 = vadd.f32 %v993, %v994
  %v996 = vsel %vm687, %v910, 0.0
  %v997 = vadd.f32 %v995, %v996
  %v998 = vsel %vm687, %v911, 0.0
  %v999 = vadd.f32 %v997, %v998
  %v1000 = vsel %vm687, %v912, 0.0
  %v1001 = vadd.f32 %v999, %v1000
  %v1002 = vsel %vm687, %v913, 0.0
  %v1003 = vadd.f32 %v1001, %v1002
  %v1004 = vsel %vm687, %v914, 0.0
  %v1005 = vadd.f32 %v1003, %v1004
  %v1006 = vsel %vm687, %v915, 0.0
  %v1007 = vadd.f32 %v1005, %v1006
  %v1008 = vsel %vm687, %v916, 0.0
  %v1009 = vadd.f32 %v1007, %v1008
  %v1010 = vsel %vm687, %v917, 0.0
  %v1011 = vadd.f32 %v1009, %v1010
  %v1012 = vsel %vm687, %v918, 0.0
  %v1013 = vadd.f32 %v1011, %v1012
  %v1014 = vsel %vm687, %v919, 0.0
  %v1015 = vadd.f32 %v1013, %v1014
  %v1016 = vsel %vm687, %v920, 0.0
  %v1017 = vadd.f32 %v1015, %v1016
  %v1018 = vsel %vm687, %v921, 0.0
  %v1019 = vadd.f32 %v1017, %v1018
  %v1020 = vsel %vm687, %v922, 0.0
  %v1021 = vadd.f32 %v1019, %v1020
  %v1022 = vsel %vm687, %v923, 0.0
  %v1023 = vadd.f32 %v1021, %v1022
  %v1024 = vsel %vm687, %v924, 0.0
  %v1025 = vadd.f32 %v1023, %v1024
  %v1026 = vsel %vm687, %v925, 0.0
  %v1027 = vadd.f32 %v1025, %v1026
  %v1028 = vsel %vm687, %v926, 0.0
  %v1029 = vadd.f32 %v1027, %v1028
  %v1030 = vsel %vm687, %v927, 0.0
  %v1031 = vadd.f32 %v1029, %v1030
  %v1032 = vsel %vm687, %v928, 0.0
  %v1033 = vadd.f32 %v1031, %v1032
  %v1034 = vsel %vm687, %v929, 0.0
  %v1035 = vadd.f32 %v1033, %v1034
  %v1036 = vsel %vm687, %v930, 0.0
  %v1037 = vadd.f32 %v1035, %v1036
  %v1038 = vsel %vm687, %v931, 0.0
  %v1039 = vadd.f32 %v1037, %v1038
  %v1040 = vsel %vm687, %v932, 0.0
  %v1041 = vadd.f32 %v1039, %v1040
  %v1042 = vsel %vm687, %v933, 0.0
  %v1043 = vadd.f32 %v1041, %v1042
  %v1044 = vsel %vm687, %v934, 0.0
  %v1045 = vadd.f32 %v1043, %v1044
  %v1046 = vsel %vm687, %v935, 0.0
  %v1047 = vadd.f32 %v1045, %v1046
  %v1048 = vsel %vm687, %v936, 0.0
  %v1049 = vadd.f32 %v1047, %v1048
  %v1050 = vsel %vm687, %v937, 0.0
  %v1051 = vadd.f32 %v1049, %v1050
  %v1052 = vsel %vm687, %v938, 0.0
  %v1053 = vadd.f32 %v1051, %v1052
  %v1054 = vsel %vm687, %v939, 0.0
  %v1055 = vadd.f32 %v1053, %v1054
  %v1056 = vsel %vm687, %v940, 0.0
  %v1057 = vadd.f32 %v1055, %v1056
  %v1058 = vsel %vm687, %v941, 0.0
  %v1059 = vadd.f32 %v1057, %v1058
  %v1060 = vsel %vm687, %v942, 0.0
  %v1061 = vadd.f32 %v1059, %v1060
  %v1062 = vsel %vm687, %v943, 0.0
  %v1063 = vadd.f32 %v1061, %v1062
  %v1064 = vsel %vm687, %v944, 0.0
  %v1065 = vadd.f32 %v1063, %v1064
  %v1066 = vsel %vm687, %v945, 0.0
  %v1067 = vadd.f32 %v1065, %v1066
  %v1068 = vsel %vm687, %v946, 0.0
  %v1069 = vadd.f32 %v1067, %v1068
  %v1070 = vsel %vm687, %v947, 0.0
  %v1071 = vadd.f32 %v1069, %v1070
  %v1072 = vsel %vm687, %v948, 0.0
  %v1073 = vadd.f32 %v1071, %v1072
  %v1074 = vsel %vm687, %v949, 0.0
  %v1075 = vadd.f32 %v1073, %v1074
  %v1076 = vsel %vm687, %v950, 0.0
  %v1077 = vadd.f32 %v1075, %v1076
  %v1078 = vrot.slane %v1077, 4
  %v1079 = vadd.f32 %v1077, %v1078
  %v1080 = vrot.slane %v1079, 2
  %v1081 = vadd.f32 %v1079, %v1080
  %v1082 = vrot.slane %v1081, 1
  %v1083 = vadd.f32 %v1081, %v1082
  %v1084 = vmul.f32 %v1083, %v821
  %v1085 = vadd.f32 %v1084, 1e-05
  %v1086 = vrsqrt.pop %v1085
  %v1087 = vmul.f32 %v823, %v1086
  %v1088 = vmul.f32 %v824, %v1086
  %v1089 = vmul.f32 %v825, %v1086
  %v1090 = vmul.f32 %v826, %v1086
  %v1091 = vmul.f32 %v827, %v1086
  %v1092 = vmul.f32 %v828, %v1086
  %v1093 = vmul.f32 %v829, %v1086
  %v1094 = vmul.f32 %v830, %v1086
  %v1095 = vmul.f32 %v831, %v1086
  %v1096 = vmul.f32 %v832, %v1086
  %v1097 = vmul.f32 %v833, %v1086
  %v1098 = vmul.f32 %v834, %v1086
  %v1099 = vmul.f32 %v835, %v1086
  %v1100 = vmul.f32 %v836, %v1086
  %v1101 = vmul.f32 %v837, %v1086
  %v1102 = vmul.f32 %v838, %v1086
  %v1103 = vmul.f32 %v839, %v1086
  %v1104 = vmul.f32 %v840, %v1086
  %v1105 = vmul.f32 %v841, %v1086
  %v1106 = vmul.f32 %v842, %v1086
  %v1107 = vmul.f32 %v843, %v1086
  %v1108 = vmul.f32 %v844, %v1086
  %v1109 = vmul.f32 %v845, %v1086
  %v1110 = vmul.f32 %v846, %v1086
  %v1111 = vmul.f32 %v847, %v1086
  %v1112 = vmul.f32 %v848, %v1086
  %v1113 = vmul.f32 %v849, %v1086
  %v1114 = vmul.f32 %v850, %v1086
  %v1115 = vmul.f32 %v851, %v1086
  %v1116 = vmul.f32 %v852, %v1086
  %v1117 = vmul.f32 %v853, %v1086
  %v1118 = vmul.f32 %v854, %v1086
  %v1119 = vmul.f32 %v855, %v1086
  %v1120 = vmul.f32 %v856, %v1086
  %v1121 = vmul.f32 %v857, %v1086
  %v1122 = vmul.f32 %v858, %v1086
  %v1123 = vmul.f32 %v859, %v1086
  %v1124 = vmul.f32 %v860, %v1086
  %v1125 = vmul.f32 %v861, %v1086
  %v1126 = vmul.f32 %v862, %v1086
  %v1127 = vmul.f32 %v863, %v1086
  %v1128 = vmul.f32 %v864, %v1086
  %v1129 = vmul.f32 %v865, %v1086
  %v1130 = vmul.f32 %v866, %v1086
  %v1131 = vmul.f32 %v867, %v1086
  %v1132 = vmul.f32 %v868, %v1086
  %v1133 = vmul.f32 %v869, %v1086
  %v1134 = vmul.f32 %v870, %v1086
  %v1135 = vmul.f32 %v871, %v1086
  %v1136 = vmul.f32 %v872, %v1086
  %v1137 = vmul.f32 %v873, %v1086
  %v1138 = vmul.f32 %v874, %v1086
  %v1139 = vmul.f32 %v875, %v1086
  %v1140 = vmul.f32 %v876, %v1086
  %v1141 = vmul.f32 %v877, %v1086
  %v1142 = vmul.f32 %v878, %v1086
  %v1143 = vmul.f32 %v879, %v1086
  %v1144 = vmul.f32 %v880, %v1086
  %v1145 = vmul.f32 %v881, %v1086
  %v1146 = vmul.f32 %v882, %v1086
  %v1147 = vmul.f32 %v883, %v1086
  %v1148 = vmul.f32 %v884, %v1086
  %v1149 = vmul.f32 %v885, %v1086
  %v1150 = vmul.f32 %v886, %v1086
  %v1151 = vld [vmem:[%s3] sm:$0x1]
  %v1153 = vlaneseq
  %v1154 = vshrl.u32 %v1153, 7
  %v1155 = vsub.s32 0, %v1154
  %v1156 = vrot.slane %v1151, %v1155
  %v1158 = vmul.f32 %v1087, %v1156
  %v1159 = vmul.f32 %v1088, %v1156
  %v1160 = vmul.f32 %v1089, %v1156
  %v1161 = vmul.f32 %v1090, %v1156
  %v1162 = vmul.f32 %v1091, %v1156
  %v1163 = vmul.f32 %v1092, %v1156
  %v1164 = vmul.f32 %v1093, %v1156
  %v1165 = vmul.f32 %v1094, %v1156
  %v1166 = vmul.f32 %v1095, %v1156
  %v1167 = vmul.f32 %v1096, %v1156
  %v1168 = vmul.f32 %v1097, %v1156
  %v1169 = vmul.f32 %v1098, %v1156
  %v1170 = vmul.f32 %v1099, %v1156
  %v1171 = vmul.f32 %v1100, %v1156
  %v1172 = vmul.f32 %v1101, %v1156
  %v1173 = vmul.f32 %v1102, %v1156
  %v1174 = vmul.f32 %v1103, %v1156
  %v1175 = vmul.f32 %v1104, %v1156
  %v1176 = vmul.f32 %v1105, %v1156
  %v1177 = vmul.f32 %v1106, %v1156
  %v1178 = vmul.f32 %v1107, %v1156
  %v1179 = vmul.f32 %v1108, %v1156
  %v1180 = vmul.f32 %v1109, %v1156
  %v1181 = vmul.f32 %v1110, %v1156
  %v1182 = vmul.f32 %v1111, %v1156
  %v1183 = vmul.f32 %v1112, %v1156
  %v1184 = vmul.f32 %v1113, %v1156
  %v1185 = vmul.f32 %v1114, %v1156
  %v1186 = vmul.f32 %v1115, %v1156
  %v1187 = vmul.f32 %v1116, %v1156
  %v1188 = vmul.f32 %v1117, %v1156
  %v1189 = vmul.f32 %v1118, %v1156
  %v1190 = vmul.f32 %v1119, %v1156
  %v1191 = vmul.f32 %v1120, %v1156
  %v1192 = vmul.f32 %v1121, %v1156
  %v1193 = vmul.f32 %v1122, %v1156
  %v1194 = vmul.f32 %v1123, %v1156
  %v1195 = vmul.f32 %v1124, %v1156
  %v1196 = vmul.f32 %v1125, %v1156
  %v1197 = vmul.f32 %v1126, %v1156
  %v1198 = vmul.f32 %v1127, %v1156
  %v1199 = vmul.f32 %v1128, %v1156
  %v1200 = vmul.f32 %v1129, %v1156
  %v1201 = vmul.f32 %v1130, %v1156
  %v1202 = vmul.f32 %v1131, %v1156
  %v1203 = vmul.f32 %v1132, %v1156
  %v1204 = vmul.f32 %v1133, %v1156
  %v1205 = vmul.f32 %v1134, %v1156
  %v1206 = vmul.f32 %v1135, %v1156
  %v1207 = vmul.f32 %v1136, %v1156
  %v1208 = vmul.f32 %v1137, %v1156
  %v1209 = vmul.f32 %v1138, %v1156
  %v1210 = vmul.f32 %v1139, %v1156
  %v1211 = vmul.f32 %v1140, %v1156
  %v1212 = vmul.f32 %v1141, %v1156
  %v1213 = vmul.f32 %v1142, %v1156
  %v1214 = vmul.f32 %v1143, %v1156
  %v1215 = vmul.f32 %v1144, %v1156
  %v1216 = vmul.f32 %v1145, %v1156
  %v1217 = vmul.f32 %v1146, %v1156
  %v1218 = vmul.f32 %v1147, %v1156
  %v1219 = vmul.f32 %v1148, %v1156
  %v1220 = vmul.f32 %v1149, %v1156
  %v1221 = vmul.f32 %v1150, %v1156
  %v1222 = vld [vmem:[%s4] sm:$0x1]
  %v1224 = vlaneseq
  %v1225 = vshrl.u32 %v1224, 7
  %v1226 = vsub.s32 0, %v1225
  %v1227 = vrot.slane %v1222, %v1226
  %v1229 = vadd.f32 %v1158, %v1227
  %v1230 = vadd.f32 %v1159, %v1227
  %v1231 = vadd.f32 %v1160, %v1227
  %v1232 = vadd.f32 %v1161, %v1227
  %v1233 = vadd.f32 %v1162, %v1227
  %v1234 = vadd.f32 %v1163, %v1227
  %v1235 = vadd.f32 %v1164, %v1227
  %v1236 = vadd.f32 %v1165, %v1227
  %v1237 = vadd.f32 %v1166, %v1227
  %v1238 = vadd.f32 %v1167, %v1227
  %v1239 = vadd.f32 %v1168, %v1227
  %v1240 = vadd.f32 %v1169, %v1227
  %v1241 = vadd.f32 %v1170, %v1227
  %v1242 = vadd.f32 %v1171, %v1227
  %v1243 = vadd.f32 %v1172, %v1227
  %v1244 = vadd.f32 %v1173, %v1227
  %v1245 = vadd.f32 %v1174, %v1227
  %v1246 = vadd.f32 %v1175, %v1227
  %v1247 = vadd.f32 %v1176, %v1227
  %v1248 = vadd.f32 %v1177, %v1227
  %v1249 = vadd.f32 %v1178, %v1227
  %v1250 = vadd.f32 %v1179, %v1227
  %v1251 = vadd.f32 %v1180, %v1227
  %v1252 = vadd.f32 %v1181, %v1227
  %v1253 = vadd.f32 %v1182, %v1227
  %v1254 = vadd.f32 %v1183, %v1227
  %v1255 = vadd.f32 %v1184, %v1227
  %v1256 = vadd.f32 %v1185, %v1227
  %v1257 = vadd.f32 %v1186, %v1227
  %v1258 = vadd.f32 %v1187, %v1227
  %v1259 = vadd.f32 %v1188, %v1227
  %v1260 = vadd.f32 %v1189, %v1227
  %v1261 = vadd.f32 %v1190, %v1227
  %v1262 = vadd.f32 %v1191, %v1227
  %v1263 = vadd.f32 %v1192, %v1227
  %v1264 = vadd.f32 %v1193, %v1227
  %v1265 = vadd.f32 %v1194, %v1227
  %v1266 = vadd.f32 %v1195, %v1227
  %v1267 = vadd.f32 %v1196, %v1227
  %v1268 = vadd.f32 %v1197, %v1227
  %v1269 = vadd.f32 %v1198, %v1227
  %v1270 = vadd.f32 %v1199, %v1227
  %v1271 = vadd.f32 %v1200, %v1227
  %v1272 = vadd.f32 %v1201, %v1227
  %v1273 = vadd.f32 %v1202, %v1227
  %v1274 = vadd.f32 %v1203, %v1227
  %v1275 = vadd.f32 %v1204, %v1227
  %v1276 = vadd.f32 %v1205, %v1227
  %v1277 = vadd.f32 %v1206, %v1227
  %v1278 = vadd.f32 %v1207, %v1227
  %v1279 = vadd.f32 %v1208, %v1227
  %v1280 = vadd.f32 %v1209, %v1227
  %v1281 = vadd.f32 %v1210, %v1227
  %v1282 = vadd.f32 %v1211, %v1227
  %v1283 = vadd.f32 %v1212, %v1227
  %v1284 = vadd.f32 %v1213, %v1227
  %v1285 = vadd.f32 %v1214, %v1227
  %v1286 = vadd.f32 %v1215, %v1227
  %v1287 = vadd.f32 %v1216, %v1227
  %v1288 = vadd.f32 %v1217, %v1227
  %v1289 = vadd.f32 %v1218, %v1227
  %v1290 = vadd.f32 %v1219, %v1227
  %v1291 = vadd.f32 %v1220, %v1227
  %v1292 = vadd.f32 %v1221, %v1227
  %vm1293 = vcmp.ge.f32.partialorder %v1229, 0.0
  %vm1294 = vcmp.ge.f32.partialorder %v1230, 0.0
  %vm1295 = vcmp.ge.f32.partialorder %v1231, 0.0
  %vm1296 = vcmp.ge.f32.partialorder %v1232, 0.0
  %vm1297 = vcmp.ge.f32.partialorder %v1233, 0.0
  %vm1298 = vcmp.ge.f32.partialorder %v1234, 0.0
  %vm1299 = vcmp.ge.f32.partialorder %v1235, 0.0
  %vm1300 = vcmp.ge.f32.partialorder %v1236, 0.0
  %vm1301 = vcmp.ge.f32.partialorder %v1237, 0.0
  %vm1302 = vcmp.ge.f32.partialorder %v1238, 0.0
  %vm1303 = vcmp.ge.f32.partialorder %v1239, 0.0
  %vm1304 = vcmp.ge.f32.partialorder %v1240, 0.0
  %vm1305 = vcmp.ge.f32.partialorder %v1241, 0.0
  %vm1306 = vcmp.ge.f32.partialorder %v1242, 0.0
  %vm1307 = vcmp.ge.f32.partialorder %v1243, 0.0
  %vm1308 = vcmp.ge.f32.partialorder %v1244, 0.0
  %vm1309 = vcmp.ge.f32.partialorder %v1245, 0.0
  %vm1310 = vcmp.ge.f32.partialorder %v1246, 0.0
  %vm1311 = vcmp.ge.f32.partialorder %v1247, 0.0
  %vm1312 = vcmp.ge.f32.partialorder %v1248, 0.0
  %vm1313 = vcmp.ge.f32.partialorder %v1249, 0.0
  %vm1314 = vcmp.ge.f32.partialorder %v1250, 0.0
  %vm1315 = vcmp.ge.f32.partialorder %v1251, 0.0
  %vm1316 = vcmp.ge.f32.partialorder %v1252, 0.0
  %vm1317 = vcmp.ge.f32.partialorder %v1253, 0.0
  %vm1318 = vcmp.ge.f32.partialorder %v1254, 0.0
  %vm1319 = vcmp.ge.f32.partialorder %v1255, 0.0
  %vm1320 = vcmp.ge.f32.partialorder %v1256, 0.0
  %vm1321 = vcmp.ge.f32.partialorder %v1257, 0.0
  %vm1322 = vcmp.ge.f32.partialorder %v1258, 0.0
  %vm1323 = vcmp.ge.f32.partialorder %v1259, 0.0
  %vm1324 = vcmp.ge.f32.partialorder %v1260, 0.0
  %vm1325 = vcmp.ge.f32.partialorder %v1261, 0.0
  %vm1326 = vcmp.ge.f32.partialorder %v1262, 0.0
  %vm1327 = vcmp.ge.f32.partialorder %v1263, 0.0
  %vm1328 = vcmp.ge.f32.partialorder %v1264, 0.0
  %vm1329 = vcmp.ge.f32.partialorder %v1265, 0.0
  %vm1330 = vcmp.ge.f32.partialorder %v1266, 0.0
  %vm1331 = vcmp.ge.f32.partialorder %v1267, 0.0
  %vm1332 = vcmp.ge.f32.partialorder %v1268, 0.0
  %vm1333 = vcmp.ge.f32.partialorder %v1269, 0.0
  %vm1334 = vcmp.ge.f32.partialorder %v1270, 0.0
  %vm1335 = vcmp.ge.f32.partialorder %v1271, 0.0
  %vm1336 = vcmp.ge.f32.partialorder %v1272, 0.0
  %vm1337 = vcmp.ge.f32.partialorder %v1273, 0.0
  %vm1338 = vcmp.ge.f32.partialorder %v1274, 0.0
  %vm1339 = vcmp.ge.f32.partialorder %v1275, 0.0
  %vm1340 = vcmp.ge.f32.partialorder %v1276, 0.0
  %vm1341 = vcmp.ge.f32.partialorder %v1277, 0.0
  %vm1342 = vcmp.ge.f32.partialorder %v1278, 0.0
  %vm1343 = vcmp.ge.f32.partialorder %v1279, 0.0
  %vm1344 = vcmp.ge.f32.partialorder %v1280, 0.0
  %vm1345 = vcmp.ge.f32.partialorder %v1281, 0.0
  %vm1346 = vcmp.ge.f32.partialorder %v1282, 0.0
  %vm1347 = vcmp.ge.f32.partialorder %v1283, 0.0
  %vm1348 = vcmp.ge.f32.partialorder %v1284, 0.0
  %vm1349 = vcmp.ge.f32.partialorder %v1285, 0.0
  %vm1350 = vcmp.ge.f32.partialorder %v1286, 0.0
  %vm1351 = vcmp.ge.f32.partialorder %v1287, 0.0
  %vm1352 = vcmp.ge.f32.partialorder %v1288, 0.0
  %vm1353 = vcmp.ge.f32.partialorder %v1289, 0.0
  %vm1354 = vcmp.ge.f32.partialorder %v1290, 0.0
  %vm1355 = vcmp.ge.f32.partialorder %v1291, 0.0
  %vm1356 = vcmp.ge.f32.partialorder %v1292, 0.0
  %v1357 = vmul.f32 %v1229, 0.1
  %v1358 = vmul.f32 %v1230, 0.1
  %v1359 = vmul.f32 %v1231, 0.1
  %v1360 = vmul.f32 %v1232, 0.1
  %v1361 = vmul.f32 %v1233, 0.1
  %v1362 = vmul.f32 %v1234, 0.1
  %v1363 = vmul.f32 %v1235, 0.1
  %v1364 = vmul.f32 %v1236, 0.1
  %v1365 = vmul.f32 %v1237, 0.1
  %v1366 = vmul.f32 %v1238, 0.1
  %v1367 = vmul.f32 %v1239, 0.1
  %v1368 = vmul.f32 %v1240, 0.1
  %v1369 = vmul.f32 %v1241, 0.1
  %v1370 = vmul.f32 %v1242, 0.1
  %v1371 = vmul.f32 %v1243, 0.1
  %v1372 = vmul.f32 %v1244, 0.1
  %v1373 = vmul.f32 %v1245, 0.1
  %v1374 = vmul.f32 %v1246, 0.1
  %v1375 = vmul.f32 %v1247, 0.1
  %v1376 = vmul.f32 %v1248, 0.1
  %v1377 = vmul.f32 %v1249, 0.1
  %v1378 = vmul.f32 %v1250, 0.1
  %v1379 = vmul.f32 %v1251, 0.1
  %v1380 = vmul.f32 %v1252, 0.1
  %v1381 = vmul.f32 %v1253, 0.1
  %v1382 = vmul.f32 %v1254, 0.1
  %v1383 = vmul.f32 %v1255, 0.1
  %v1384 = vmul.f32 %v1256, 0.1
  %v1385 = vmul.f32 %v1257, 0.1
  %v1386 = vmul.f32 %v1258, 0.1
  %v1387 = vmul.f32 %v1259, 0.1
  %v1388 = vmul.f32 %v1260, 0.1
  %v1389 = vmul.f32 %v1261, 0.1
  %v1390 = vmul.f32 %v1262, 0.1
  %v1391 = vmul.f32 %v1263, 0.1
  %v1392 = vmul.f32 %v1264, 0.1
  %v1393 = vmul.f32 %v1265, 0.1
  %v1394 = vmul.f32 %v1266, 0.1
  %v1395 = vmul.f32 %v1267, 0.1
  %v1396 = vmul.f32 %v1268, 0.1
  %v1397 = vmul.f32 %v1269, 0.1
  %v1398 = vmul.f32 %v1270, 0.1
  %v1399 = vmul.f32 %v1271, 0.1
  %v1400 = vmul.f32 %v1272, 0.1
  %v1401 = vmul.f32 %v1273, 0.1
  %v1402 = vmul.f32 %v1274, 0.1
  %v1403 = vmul.f32 %v1275, 0.1
  %v1404 = vmul.f32 %v1276, 0.1
  %v1405 = vmul.f32 %v1277, 0.1
  %v1406 = vmul.f32 %v1278, 0.1
  %v1407 = vmul.f32 %v1279, 0.1
  %v1408 = vmul.f32 %v1280, 0.1
  %v1409 = vmul.f32 %v1281, 0.1
  %v1410 = vmul.f32 %v1282, 0.1
  %v1411 = vmul.f32 %v1283, 0.1
  %v1412 = vmul.f32 %v1284, 0.1
  %v1413 = vmul.f32 %v1285, 0.1
  %v1414 = vmul.f32 %v1286, 0.1
  %v1415 = vmul.f32 %v1287, 0.1
  %v1416 = vmul.f32 %v1288, 0.1
  %v1417 = vmul.f32 %v1289, 0.1
  %v1418 = vmul.f32 %v1290, 0.1
  %v1419 = vmul.f32 %v1291, 0.1
  %v1420 = vmul.f32 %v1292, 0.1
  %v1421 = vsel %vm1293, %v1229, %v1357
  %v1422 = vsel %vm1294, %v1230, %v1358
  %v1423 = vsel %vm1295, %v1231, %v1359
  %v1424 = vsel %vm1296, %v1232, %v1360
  %v1425 = vsel %vm1297, %v1233, %v1361
  %v1426 = vsel %vm1298, %v1234, %v1362
  %v1427 = vsel %vm1299, %v1235, %v1363
  %v1428 = vsel %vm1300, %v1236, %v1364
  %v1429 = vsel %vm1301, %v1237, %v1365
  %v1430 = vsel %vm1302, %v1238, %v1366
  %v1431 = vsel %vm1303, %v1239, %v1367
  %v1432 = vsel %vm1304, %v1240, %v1368
  %v1433 = vsel %vm1305, %v1241, %v1369
  %v1434 = vsel %vm1306, %v1242, %v1370
  %v1435 = vsel %vm1307, %v1243, %v1371
  %v1436 = vsel %vm1308, %v1244, %v1372
  %v1437 = vsel %vm1309, %v1245, %v1373
  %v1438 = vsel %vm1310, %v1246, %v1374
  %v1439 = vsel %vm1311, %v1247, %v1375
  %v1440 = vsel %vm1312, %v1248, %v1376
  %v1441 = vsel %vm1313, %v1249, %v1377
  %v1442 = vsel %vm1314, %v1250, %v1378
  %v1443 = vsel %vm1315, %v1251, %v1379
  %v1444 = vsel %vm1316, %v1252, %v1380
  %v1445 = vsel %vm1317, %v1253, %v1381
  %v1446 = vsel %vm1318, %v1254, %v1382
  %v1447 = vsel %vm1319, %v1255, %v1383
  %v1448 = vsel %vm1320, %v1256, %v1384
  %v1449 = vsel %vm1321, %v1257, %v1385
  %v1450 = vsel %vm1322, %v1258, %v1386
  %v1451 = vsel %vm1323, %v1259, %v1387
  %v1452 = vsel %vm1324, %v1260, %v1388
  %v1453 = vsel %vm1325, %v1261, %v1389
  %v1454 = vsel %vm1326, %v1262, %v1390
  %v1455 = vsel %vm1327, %v1263, %v1391
  %v1456 = vsel %vm1328, %v1264, %v1392
  %v1457 = vsel %vm1329, %v1265, %v1393
  %v1458 = vsel %vm1330, %v1266, %v1394
  %v1459 = vsel %vm1331, %v1267, %v1395
  %v1460 = vsel %vm1332, %v1268, %v1396
  %v1461 = vsel %vm1333, %v1269, %v1397
  %v1462 = vsel %vm1334, %v1270, %v1398
  %v1463 = vsel %vm1335, %v1271, %v1399
  %v1464 = vsel %vm1336, %v1272, %v1400
  %v1465 = vsel %vm1337, %v1273, %v1401
  %v1466 = vsel %vm1338, %v1274, %v1402
  %v1467 = vsel %vm1339, %v1275, %v1403
  %v1468 = vsel %vm1340, %v1276, %v1404
  %v1469 = vsel %vm1341, %v1277, %v1405
  %v1470 = vsel %vm1342, %v1278, %v1406
  %v1471 = vsel %vm1343, %v1279, %v1407
  %v1472 = vsel %vm1344, %v1280, %v1408
  %v1473 = vsel %vm1345, %v1281, %v1409
  %v1474 = vsel %vm1346, %v1282, %v1410
  %v1475 = vsel %vm1347, %v1283, %v1411
  %v1476 = vsel %vm1348, %v1284, %v1412
  %v1477 = vsel %vm1349, %v1285, %v1413
  %v1478 = vsel %vm1350, %v1286, %v1414
  %v1479 = vsel %vm1351, %v1287, %v1415
  %v1480 = vsel %vm1352, %v1288, %v1416
  %v1481 = vsel %vm1353, %v1289, %v1417
  %v1482 = vsel %vm1354, %v1290, %v1418
  %v1483 = vsel %vm1355, %v1291, %v1419
  %v1484 = vsel %vm1356, %v1292, %v1420
  %1485 = vst.msk [vmem:[%s5] sm:$0xff] %vm687, %v1421
  %1486 = vst.msk [vmem:[%s5 + $0x8] sm:$0xff] %vm687, %v1422
  %1487 = vst.msk [vmem:[%s5 + $0x10] sm:$0xff] %vm687, %v1423
  %1488 = vst.msk [vmem:[%s5 + $0x18] sm:$0xff] %vm687, %v1424
  %1489 = vst.msk [vmem:[%s5 + $0x20] sm:$0xff] %vm687, %v1425
  %1490 = vst.msk [vmem:[%s5 + $0x28] sm:$0xff] %vm687, %v1426
  %1491 = vst.msk [vmem:[%s5 + $0x30] sm:$0xff] %vm687, %v1427
  %1492 = vst.msk [vmem:[%s5 + $0x38] sm:$0xff] %vm687, %v1428
  %1493 = vst.msk [vmem:[%s5 + $0x40] sm:$0xff] %vm687, %v1429
  %1494 = vst.msk [vmem:[%s5 + $0x48] sm:$0xff] %vm687, %v1430
  %1495 = vst.msk [vmem:[%s5 + $0x50] sm:$0xff] %vm687, %v1431
  %1496 = vst.msk [vmem:[%s5 + $0x58] sm:$0xff] %vm687, %v1432
  %1497 = vst.msk [vmem:[%s5 + $0x60] sm:$0xff] %vm687, %v1433
  %1498 = vst.msk [vmem:[%s5 + $0x68] sm:$0xff] %vm687, %v1434
  %1499 = vst.msk [vmem:[%s5 + $0x70] sm:$0xff] %vm687, %v1435
  %1500 = vst.msk [vmem:[%s5 + $0x78] sm:$0xff] %vm687, %v1436
  %1501 = vst.msk [vmem:[%s5 + $0x80] sm:$0xff] %vm687, %v1437
  %1502 = vst.msk [vmem:[%s5 + $0x88] sm:$0xff] %vm687, %v1438
  %1503 = vst.msk [vmem:[%s5 + $0x90] sm:$0xff] %vm687, %v1439
  %1504 = vst.msk [vmem:[%s5 + $0x98] sm:$0xff] %vm687, %v1440
  %1505 = vst.msk [vmem:[%s5 + $0xa0] sm:$0xff] %vm687, %v1441
  %1506 = vst.msk [vmem:[%s5 + $0xa8] sm:$0xff] %vm687, %v1442
  %1507 = vst.msk [vmem:[%s5 + $0xb0] sm:$0xff] %vm687, %v1443
  %1508 = vst.msk [vmem:[%s5 + $0xb8] sm:$0xff] %vm687, %v1444
  %1509 = vst.msk [vmem:[%s5 + $0xc0] sm:$0xff] %vm687, %v1445
  %1510 = vst.msk [vmem:[%s5 + $0xc8] sm:$0xff] %vm687, %v1446
  %1511 = vst.msk [vmem:[%s5 + $0xd0] sm:$0xff] %vm687, %v1447
  %1512 = vst.msk [vmem:[%s5 + $0xd8] sm:$0xff] %vm687, %v1448
  %1513 = vst.msk [vmem:[%s5 + $0xe0] sm:$0xff] %vm687, %v1449
  %1514 = vst.msk [vmem:[%s5 + $0xe8] sm:$0xff] %vm687, %v1450
  %1515 = vst.msk [vmem:[%s5 + $0xf0] sm:$0xff] %vm687, %v1451
  %1516 = vst.msk [vmem:[%s5 + $0xf8] sm:$0xff] %vm687, %v1452
  %1517 = vst.msk [vmem:[%s5 + $0x100] sm:$0xff] %vm687, %v1453
  %1518 = vst.msk [vmem:[%s5 + $0x108] sm:$0xff] %vm687, %v1454
  %1519 = vst.msk [vmem:[%s5 + $0x110] sm:$0xff] %vm687, %v1455
  %1520 = vst.msk [vmem:[%s5 + $0x118] sm:$0xff] %vm687, %v1456
  %1521 = vst.msk [vmem:[%s5 + $0x120] sm:$0xff] %vm687, %v1457
  %1522 = vst.msk [vmem:[%s5 + $0x128] sm:$0xff] %vm687, %v1458
  %1523 = vst.msk [vmem:[%s5 + $0x130] sm:$0xff] %vm687, %v1459
  %1524 = vst.msk [vmem:[%s5 + $0x138] sm:$0xff] %vm687, %v1460
  %1525 = vst.msk [vmem:[%s5 + $0x140] sm:$0xff] %vm687, %v1461
  %1526 = vst.msk [vmem:[%s5 + $0x148] sm:$0xff] %vm687, %v1462
  %1527 = vst.msk [vmem:[%s5 + $0x150] sm:$0xff] %vm687, %v1463
  %1528 = vst.msk [vmem:[%s5 + $0x158] sm:$0xff] %vm687, %v1464
  %1529 = vst.msk [vmem:[%s5 + $0x160] sm:$0xff] %vm687, %v1465
  %1530 = vst.msk [vmem:[%s5 + $0x168] sm:$0xff] %vm687, %v1466
  %1531 = vst.msk [vmem:[%s5 + $0x170] sm:$0xff] %vm687, %v1467
  %1532 = vst.msk [vmem:[%s5 + $0x178] sm:$0xff] %vm687, %v1468
  %1533 = vst.msk [vmem:[%s5 + $0x180] sm:$0xff] %vm687, %v1469
  %1534 = vst.msk [vmem:[%s5 + $0x188] sm:$0xff] %vm687, %v1470
  %1535 = vst.msk [vmem:[%s5 + $0x190] sm:$0xff] %vm687, %v1471
  %1536 = vst.msk [vmem:[%s5 + $0x198] sm:$0xff] %vm687, %v1472
  %1537 = vst.msk [vmem:[%s5 + $0x1a0] sm:$0xff] %vm687, %v1473
  %1538 = vst.msk [vmem:[%s5 + $0x1a8] sm:$0xff] %vm687, %v1474
  %1539 = vst.msk [vmem:[%s5 + $0x1b0] sm:$0xff] %vm687, %v1475
  %1540 = vst.msk [vmem:[%s5 + $0x1b8] sm:$0xff] %vm687, %v1476
  %1541 = vst.msk [vmem:[%s5 + $0x1c0] sm:$0xff] %vm687, %v1477
  %1542 = vst.msk [vmem:[%s5 + $0x1c8] sm:$0xff] %vm687, %v1478
  %1543 = vst.msk [vmem:[%s5 + $0x1d0] sm:$0xff] %vm687, %v1479
  %1544 = vst.msk [vmem:[%s5 + $0x1d8] sm:$0xff] %vm687, %v1480
  %1545 = vst.msk [vmem:[%s5 + $0x1e0] sm:$0xff] %vm687, %v1481
  %1546 = vst.msk [vmem:[%s5 + $0x1e8] sm:$0xff] %vm687, %v1482
  %1547 = vst.msk [vmem:[%s5 + $0x1f0] sm:$0xff] %vm687, %v1483
  %1548 = vst.msk [vmem:[%s5 + $0x1f8] sm:$0xff] %vm687, %v1484
  // Predicated region
  $region22: #{tpu_custom_call.1} parent=0 // pred_check
    _
  $region23: #{tpu_custom_call.1} parent=0 // pred_check_branch
    %1550 = sbr.rel (0) target = $region25
  $region24: #{tpu_custom_call.1} parent=0 // pred_region
    _
  $region25: #{tpu_custom_call.1} parent=0 // pred_fallthru
    _
  // Predicated region
  $region26: #{tpu_custom_call.1} parent=0 // pred_check
    _
  $region27: #{tpu_custom_call.1} parent=0 // pred_check_branch
    %1552 = sbr.rel (0) target = $region29
  $region28: #{tpu_custom_call.1} parent=0 // pred_region
    _
  $region29: #{tpu_custom_call.1} parent=0 // pred_fallthru
    _

</llo_original>
